<compile_context>
chip_gen: v5e
topology: v5e:2x2
jax: 0.10.0
libtpu: 0.0.40
codegen_flags: <defaults>
</compile_context>

<pallas_src>
import functools

import numpy as np

import jax
import jax.numpy as jnp
from jax import lax
from jax.experimental import pallas as pl
from jax.experimental.pallas import tpu as pltpu


BRANCH_ORDER = ("b1", "b3", "b5", "b7", "b11")

# (KH, KW, pad_h, pad_w) for every conv stage, per branch (mirrors msstMoudel,
# stride=(1,1)).
BRANCH_STAGES = {
    "b1":  [(1, 1, 0, 0)],
    "b3":  [(1, 1, 0, 0), (3, 3, 1, 1)],
    "b5":  [(1, 1, 0, 0), (5, 1, 2, 0), (1, 5, 0, 2)],
    "b7":  [(1, 1, 0, 0), (7, 1, 3, 0), (1, 7, 0, 3)],
    "b11": [(1, 1, 0, 0), (11, 1, 5, 0)],
}


# -----------------------------------------------------------------------------
# Fused Pallas kernel: all branches / stages for a block of batch elements.
# -----------------------------------------------------------------------------
def _make_fused_kernel(Cin, HW, nb, c1_rows, branches):
    """branches: per branch (in output order) a tuple
         (y1_row_offset, branch_width, stages)
       stages: tuple of (w_row_offset, cin_s, cout_s, K, taps)
       taps:   tuple of (flat_shift, mask_row_or_None), kh-major / kw-minor.
    """

    def kernel(x_ref, w_ref, b_ref, m_ref, o_ref, ibuf):
        for n in range(nb):                       # static unroll over batch block
            # ---- stage 1: the five 1x1 convs as ONE stacked matmul --------
            x_bf = x_ref[n].astype(jnp.bfloat16)               # (Cin, HW)
            acc1 = jnp.dot(w_ref[0:c1_rows, 0:Cin], x_bf,
                           preferred_element_type=jnp.float32)
            # Folded BN bias + ReLU epilogue stays f32 (v5e-safe).
            y1 = jnp.maximum(acc1 + b_ref[0:c1_rows, :], 0.0)  # (c1_rows, HW)

            # ---- per-branch tapped stages: im2col + one matmul each -------
            out_off = 0
            for (y_off, bw, stages) in branches:
                y = y1[y_off:y_off + bw, :]                    # (bw, HW) f32
                for (wrow, cin_s, cout_s, K, taps) in stages:
                    for t, (shift, mrow) in enumerate(taps):
                        if shift == 0:
                            win = y
                        else:
                            # In-register spatial shift on the flattened H*W
                            # lane axis (XLU rotate); wrapped / out-of-image
                            # positions are killed by a precomputed mask.
                            win = pltpu.roll(y, shift=(-shift) % HW, axis=1)
                        if mrow is not None:
                            win = win * m_ref[mrow:mrow + 1, :]
                        ibuf[t * cin_s:(t + 1) * cin_s, :] = win
                    acc = jnp.dot(w_ref[wrow:wrow + cout_s, 0:K],
                                  ibuf[0:K, :].astype(jnp.bfloat16),
                                  preferred_element_type=jnp.float32)
                    y = jnp.maximum(acc + b_ref[wrow:wrow + cout_s, :], 0.0)
                # ctot is tiny here, so the per-branch masked sub-tile store is
                # cheap; see TODO at top for the single-store variant.
                o_ref[n, out_off:out_off + bw, :] = y.astype(o_ref.dtype)
                out_off += bw

    return kernel


# -----------------------------------------------------------------------------
# Host-side parameter packing: fold BN, stack the 1x1 stage, im2col-reshape the
# tapped stages, pack everything into 3 buffers + static kernel config.
# -----------------------------------------------------------------------------
def _pack_msst_params(params, Cin, H, W):
    HW = H * W

    # Stage 1: stack the five branch 1x1 convs (BN scale folded into weights).
    w1, b1, widths = [], [], []
    for name in BRANCH_ORDER:
        w, scale, bias = params[name][0]
        w, scale, bias = np.asarray(w), np.asarray(scale), np.asarray(bias)
        cout = w.shape[-1]
        widths.append(cout)
        w1.append(w[0, 0].T * scale[:, None])                  # (cout, Cin)
        b1.append(bias)
    c1_rows = int(sum(widths))

    # Tapped stages: fold BN, reshape to im2col layout (cout, KH*KW*cin).
    entries = []
    for bi, name in enumerate(BRANCH_ORDER):
        for (KH, KW, ph, pw), (w, scale, bias) in zip(BRANCH_STAGES[name][1:],
                                                      params[name][1:]):
            w, scale, bias = np.asarray(w), np.asarray(scale), np.asarray(bias)
            cin_s, cout_s = w.shape[2], w.shape[3]
            W2 = np.transpose(w * scale.reshape(1, 1, 1, -1),
                              (3, 0, 1, 2)).reshape(cout_s, KH * KW * cin_s)
            taps = [(kh - ph, kw - pw) for kh in range(KH) for kw in range(KW)]
            entries.append((bi, W2, bias, taps, cin_s, cout_s))

    # Boundary masks: one (1, HW) row per distinct nonzero (dh, dw) shift.
    shifts = sorted({t for (_, _, _, taps, _, _) in entries
                     for t in taps if t != (0, 0)})
    mrow = {s: i for i, s in enumerate(shifts)}
    hh = np.repeat(np.arange(H), W)
    ww = np.tile(np.arange(W), H)
    if shifts:
        mbuf = np.stack(
            [((hh + dh >= 0) & (hh + dh < H) & (ww + dw >= 0) & (ww + dw < W))
             .astype(np.float32) for (dh, dw) in shifts], axis=0)
    else:
        mbuf = np.ones((1, HW), np.float32)

    # Pack all stage weights / biases into two host buffers.
    total_rows = c1_rows + int(sum(e[5] for e in entries))
    kmax = max([Cin] + [e[1].shape[1] for e in entries])
    wbuf = np.zeros((total_rows, kmax), np.float32)
    bbuf = np.zeros((total_rows, 1), np.float32)
    wbuf[0:c1_rows, 0:Cin] = np.concatenate(w1, axis=0)
    bbuf[0:c1_rows, 0] = np.concatenate(b1, axis=0)

    per_branch_stages = [[] for _ in BRANCH_ORDER]
    row = c1_rows
    for (bi, W2, bias, taps, cin_s, cout_s) in entries:
        K = W2.shape[1]
        wbuf[row:row + cout_s, 0:K] = W2
        bbuf[row:row + cout_s, 0] = bias
        tap_cfg = tuple(
            (dh * W + dw, (mrow[(dh, dw)] if (dh, dw) != (0, 0) else None))
            for (dh, dw) in taps)
        per_branch_stages[bi].append((row, cin_s, cout_s, K, tap_cfg))
        row += cout_s

    branches = []
    y_off = 0
    for bi, bw in enumerate(widths):
        branches.append((y_off, bw, tuple(per_branch_stages[bi])))
        y_off += bw

    ibuf_rows = max([8] + [s[3] for b in branches for s in b[2]])
    return (jnp.asarray(wbuf, jnp.bfloat16),      # bf16 MXU weights
            jnp.asarray(bbuf, jnp.float32),       # folded biases
            jnp.asarray(mbuf, jnp.float32),       # boundary masks
            c1_rows, tuple(branches), ibuf_rows, int(sum(widths)))


# -----------------------------------------------------------------------------
# Public forward pass (NCHW in / NCHW out), single pallas_call.
# -----------------------------------------------------------------------------
def msst_forward(x_nchw, params, *, batch_block=1):
    N, Cin, H, W = x_nchw.shape
    HW = H * W
    (wbuf, bbuf, mbuf, c1_rows, branches, ibuf_rows, ctot) = _pack_msst_params(
        params, Cin, H, W)

    nb = batch_block
    assert N % nb == 0, "batch_block must divide the batch size"

    x = x_nchw.reshape(N, Cin, HW)                              # free reshape

    kernel = _make_fused_kernel(Cin, HW, nb, c1_rows, branches)

    out = pl.pallas_call(
        kernel,
        out_shape=jax.ShapeDtypeStruct((N, ctot, HW), jnp.float32),
        grid=(N // nb,),
        in_specs=[
            pl.BlockSpec((nb, Cin, HW), lambda i: (i, 0, 0)),
            pl.BlockSpec(wbuf.shape, lambda i: (0, 0)),   # packed weights (bf16)
            pl.BlockSpec(bbuf.shape, lambda i: (0, 0)),   # packed folded biases
            pl.BlockSpec(mbuf.shape, lambda i: (0, 0)),   # boundary masks
        ],
        out_specs=pl.BlockSpec((nb, ctot, HW), lambda i: (i, 0, 0)),
        scratch_shapes=[pltpu.VMEM((ibuf_rows, HW), jnp.float32)],  # im2col buf
        compiler_params=pltpu.CompilerParams(
            dimension_semantics=("parallel",)),
    )(x, wbuf, bbuf, mbuf)

    return out.reshape(N, ctot, H, W)                           # free reshape


# -----------------------------------------------------------------------------
# Deterministic parameter construction (Conv2d weight/bias + folded BN affine).
# -----------------------------------------------------------------------------
def _init_conv_bn(key, cin, cout, kh, kw):
    k1, k2 = jax.random.split(key)
    fan_in = cin * kh * kw
    w = jax.random.normal(k1, (kh, kw, cin, cout), jnp.float32) / jnp.sqrt(fan_in)
    b = jax.random.normal(k2, (cout,), jnp.float32) * 0.05
    # BatchNorm2d fresh init, inference mode: gamma=1, beta=0, mean=0, var=1.
    gamma = jnp.ones((cout,), jnp.float32)
    beta = jnp.zeros((cout,), jnp.float32)
    run_mean = jnp.zeros((cout,), jnp.float32)
    run_var = jnp.ones((cout,), jnp.float32)
    eps = 1e-5
    scale = gamma / jnp.sqrt(run_var + eps)
    bias = (b - run_mean) * scale + beta
    return w, scale, bias


def init_msst_params(key, inchannel, o1, o3, o5, o7, o11):
    keys = jax.random.split(key, 11)
    return {
        "b1": [_init_conv_bn(keys[0], inchannel, o1, 1, 1)],
        "b3": [_init_conv_bn(keys[1], inchannel, o3, 1, 1),
               _init_conv_bn(keys[2], o3, o3, 3, 3)],
        "b5": [_init_conv_bn(keys[3], inchannel, o5, 1, 1),
               _init_conv_bn(keys[4], o5, o5, 5, 1),
               _init_conv_bn(keys[5], o5, o5, 1, 5)],
        "b7": [_init_conv_bn(keys[6], inchannel, o7, 1, 1),
               _init_conv_bn(keys[7], o7, o7, 7, 1),
               _init_conv_bn(keys[8], o7, o7, 1, 7)],
        "b11": [_init_conv_bn(keys[9], inchannel, o11, 1, 1),
                _init_conv_bn(keys[10], o11, o11, 11, 1)],
    }


# -----------------------------------------------------------------------------
# Pure-JAX reference (validation only).
# -----------------------------------------------------------------------------
def _conv_bn_relu_ref(x_nchw, w_hwio, scale, bias, padding):
    ph, pw = padding
    y = lax.conv_general_dilated(
        x_nchw, w_hwio, window_strides=(1, 1),
        padding=((ph, ph), (pw, pw)),
        dimension_numbers=("NCHW", "HWIO", "NCHW"))
    y = y * scale.reshape(1, -1, 1, 1) + bias.reshape(1, -1, 1, 1)
    return jnp.maximum(y, 0.0)


def msst_forward_ref(x_nchw, params):
    outs = []
    for name in BRANCH_ORDER:
        t = x_nchw
        for (KH, KW, ph, pw), (w, scale, bias) in zip(BRANCH_STAGES[name],
                                                      params[name]):
            t = _conv_bn_relu_ref(t, w, scale, bias, (ph, pw))
        outs.append(t)
    return jnp.concatenate(outs, axis=1)


if __name__ == "__main__":
    key = jax.random.PRNGKey(0)
    k_param, k_x = jax.random.split(key)

    inchannel, o1, o3, o5, o7, o11 = 4, 4, 4, 4, 4, 4
    params = init_msst_params(k_param, inchannel, o1, o3, o5, o7, o11)

    x = jax.random.normal(k_x, (2, inchannel, 16, 16), jnp.float32)   # NCHW

    # batch_block=1 keeps one image per grid step ("parallel" -> both v7x TCs);
    # on single-TC v5e/v6e, batch_block=N folds the batch into one step.
    fwd = jax.jit(functools.partial(msst_forward, params=params, batch_block=1))
    out = fwd(x)
    jax.block_until_ready(out)

    ref = msst_forward_ref(x, params)
    assert out.shape == (2, o1 + o3 + o5 + o7 + o11, 16, 16), out.shape
    # bf16 MXU operands (f32 accumulation / epilogue) -> looser tolerance than
    # the pure-f32 v1 kernel; structural bugs would still show up as O(1) error.
    assert jnp.allclose(out, ref, rtol=6e-2, atol=6e-2), (
        float(jnp.max(jnp.abs(out - ref))))

    print("KERNEL_OK")
</pallas_src>

<mosaic_0001>
module attributes {stable_mosaic.version = 11 : i64} {
  func.func @kernel(%arg0: i32, %arg1: memref<1x4x256xf32, #tpu.memory_space<vmem>>, %arg2: memref<44x44xbf16, #tpu.memory_space<vmem>>, %arg3: memref<44x1xf32, #tpu.memory_space<vmem>>, %arg4: memref<20x256xf32, #tpu.memory_space<vmem>>, %arg5: memref<1x20x256xf32, #tpu.memory_space<vmem>>, %arg6: memref<44x256xf32, #tpu.memory_space<vmem>>) attributes {dimension_semantics = [#tpu.dimension_semantics<parallel>], iteration_bounds = array<i64: 2>, scalar_prefetch = 0 : i64, scratch_operands = 1 : i64, tpu.core_type = #tpu.core_type<tc>, window_params = [{transform_indices = @transform_0, window_bounds = array<i64: 1, 4, 256>}, {pipeline_mode = #tpu.pipeline_mode<synchronous>, transform_indices = @transform_1, window_bounds = array<i64: 44, 44>}, {pipeline_mode = #tpu.pipeline_mode<synchronous>, transform_indices = @transform_2, window_bounds = array<i64: 44, 1>}, {pipeline_mode = #tpu.pipeline_mode<synchronous>, transform_indices = @transform_3, window_bounds = array<i64: 20, 256>}, {transform_indices = @transform_4, window_bounds = array<i64: 1, 20, 256>}]} {
    %c0 = arith.constant 0 : index
    %c0_0 = arith.constant 0 : index
    %c0_1 = arith.constant 0 : index
    %0 = vector.load %arg1[%c0, %c0_0, %c0_1] : memref<1x4x256xf32, #tpu.memory_space<vmem>>, vector<1x4x256xf32>
    %1 = vector.shape_cast %0 : vector<1x4x256xf32> to vector<4x256xf32>
    %2 = arith.truncf %1 : vector<4x256xf32> to vector<4x256xbf16>
    %c0_2 = arith.constant 0 : index
    %c0_3 = arith.constant 0 : index
    %3 = vector.load %arg2[%c0_2, %c0_3] : memref<44x44xbf16, #tpu.memory_space<vmem>>, vector<20x4xbf16>
    %cst = arith.constant dense<0.000000e+00> : vector<20x256xf32>
    %4 = tpu.matmul %3, %2, %cst {dimension_numbers = #tpu.dot_dimension_numbers<[1], [0], [0], [1], [0, 0, 1, 1], [], []>} : vector<20x4xbf16>, vector<4x256xbf16>, vector<20x256xf32> -> vector<20x256xf32>
    %c0_4 = arith.constant 0 : index
    %c0_5 = arith.constant 0 : index
    %5 = vector.load %arg3[%c0_4, %c0_5] : memref<44x1xf32, #tpu.memory_space<vmem>>, vector<20x1xf32>
    %6 = vector.broadcast %5 : vector<20x1xf32> to vector<20x256xf32>
    %7 = arith.addf %4, %6 : vector<20x256xf32>
    %cst_6 = arith.constant 0.000000e+00 : f32
    %8 = vector.broadcast %cst_6 : f32 to vector<20x256xf32>
    %9 = arith.maximumf %7, %8 : vector<20x256xf32>
    %10 = vector.extract_strided_slice %9 {offsets = [0, 0], sizes = [4, 256], strides = [1, 1]} : vector<20x256xf32> to vector<4x256xf32>
    %c0_7 = arith.constant 0 : index
    %c0_8 = arith.constant 0 : index
    %c0_9 = arith.constant 0 : index
    %11 = vector.load %arg5[%c0_7, %c0_8, %c0_9] : memref<1x20x256xf32, #tpu.memory_space<vmem>>, vector<1x4x256xf32>
    %12 = vector.shape_cast %11 : vector<1x4x256xf32> to vector<4x256xf32>
    %13 = vector.shape_cast %10 : vector<4x256xf32> to vector<1x4x256xf32>
    tpu.vector_store %arg5[%c0_7, %c0_8, %c0_9], %13 {strides = array<i32>} : memref<1x20x256xf32, #tpu.memory_space<vmem>>, vector<1x4x256xf32>,
    %14 = vector.extract_strided_slice %9 {offsets = [4, 0], sizes = [4, 256], strides = [1, 1]} : vector<20x256xf32> to vector<4x256xf32>
    %c17_i32 = arith.constant 17 : i32
    %15 = tpu.dynamic_rotate %14 by %c17_i32 dim 1 : vector<4x256xf32>, i32 -> vector<4x256xf32>
    %c4 = arith.constant 4 : index
    %c0_10 = arith.constant 0 : index
    %16 = vector.load %arg4[%c4, %c0_10] : memref<20x256xf32, #tpu.memory_space<vmem>>, vector<1x256xf32>
    %17 = vector.broadcast %16 : vector<1x256xf32> to vector<4x256xf32>
    %18 = arith.mulf %15, %17 : vector<4x256xf32>
    %c0_11 = arith.constant 0 : index
    %c0_12 = arith.constant 0 : index
    %19 = vector.load %arg6[%c0_11, %c0_12] : memref<44x256xf32, #tpu.memory_space<vmem>>, vector<4x256xf32>
    tpu.vector_store %arg6[%c0_11, %c0_12], %18 {strides = array<i32>} : memref<44x256xf32, #tpu.memory_space<vmem>>, vector<4x256xf32>,
    %c16_i32 = arith.constant 16 : i32
    %20 = tpu.dynamic_rotate %14 by %c16_i32 dim 1 : vector<4x256xf32>, i32 -> vector<4x256xf32>
    %c5 = arith.constant 5 : index
    %c0_13 = arith.constant 0 : index
    %21 = vector.load %arg4[%c5, %c0_13] : memref<20x256xf32, #tpu.memory_space<vmem>>, vector<1x256xf32>
    %22 = vector.broadcast %21 : vector<1x256xf32> to vector<4x256xf32>
    %23 = arith.mulf %20, %22 : vector<4x256xf32>
    %c4_14 = arith.constant 4 : index
    %c0_15 = arith.constant 0 : index
    %24 = vector.load %arg6[%c4_14, %c0_15] : memref<44x256xf32, #tpu.memory_space<vmem>>, vector<4x256xf32>
    tpu.vector_store %arg6[%c4_14, %c0_15], %23 {strides = array<i32>} : memref<44x256xf32, #tpu.memory_space<vmem>>, vector<4x256xf32>,
    %c15_i32 = arith.constant 15 : i32
    %25 = tpu.dynamic_rotate %14 by %c15_i32 dim 1 : vector<4x256xf32>, i32 -> vector<4x256xf32>
    %c6 = arith.constant 6 : index
    %c0_16 = arith.constant 0 : index
    %26 = vector.load %arg4[%c6, %c0_16] : memref<20x256xf32, #tpu.memory_space<vmem>>, vector<1x256xf32>
    %27 = vector.broadcast %26 : vector<1x256xf32> to vector<4x256xf32>
    %28 = arith.mulf %25, %27 : vector<4x256xf32>
    %c8 = arith.constant 8 : index
    %c0_17 = arith.constant 0 : index
    %29 = vector.load %arg6[%c8, %c0_17] : memref<44x256xf32, #tpu.memory_space<vmem>>, vector<4x256xf32>
    tpu.vector_store %arg6[%c8, %c0_17], %28 {strides = array<i32>} : memref<44x256xf32, #tpu.memory_space<vmem>>, vector<4x256xf32>,
    %c1_i32 = arith.constant 1 : i32
    %30 = tpu.dynamic_rotate %14 by %c1_i32 dim 1 : vector<4x256xf32>, i32 -> vector<4x256xf32>
    %c9 = arith.constant 9 : index
    %c0_18 = arith.constant 0 : index
    %31 = vector.load %arg4[%c9, %c0_18] : memref<20x256xf32, #tpu.memory_space<vmem>>, vector<1x256xf32>
    %32 = vector.broadcast %31 : vector<1x256xf32> to vector<4x256xf32>
    %33 = arith.mulf %30, %32 : vector<4x256xf32>
    %c12 = arith.constant 12 : index
    %c0_19 = arith.constant 0 : index
    %34 = vector.load %arg6[%c12, %c0_19] : memref<44x256xf32, #tpu.memory_space<vmem>>, vector<4x256xf32>
    tpu.vector_store %arg6[%c12, %c0_19], %33 {strides = array<i32>} : memref<44x256xf32, #tpu.memory_space<vmem>>, vector<4x256xf32>,
    %c16 = arith.constant 16 : index
    %c0_20 = arith.constant 0 : index
    %35 = vector.load %arg6[%c16, %c0_20] : memref<44x256xf32, #tpu.memory_space<vmem>>, vector<4x256xf32>
    tpu.vector_store %arg6[%c16, %c0_20], %14 {strides = array<i32>} : memref<44x256xf32, #tpu.memory_space<vmem>>, vector<4x256xf32>,
    %c255_i32 = arith.constant 255 : i32
    %36 = tpu.dynamic_rotate %14 by %c255_i32 dim 1 : vector<4x256xf32>, i32 -> vector<4x256xf32>
    %c10 = arith.constant 10 : index
    %c0_21 = arith.constant 0 : index
    %37 = vector.load %arg4[%c10, %c0_21] : memref<20x256xf32, #tpu.memory_space<vmem>>, vector<1x256xf32>
    %38 = vector.broadcast %37 : vector<1x256xf32> to vector<4x256xf32>
    %39 = arith.mulf %36, %38 : vector<4x256xf32>
    %c20 = arith.constant 20 : index
    %c0_22 = arith.constant 0 : index
    %40 = vector.load %arg6[%c20, %c0_22] : memref<44x256xf32, #tpu.memory_space<vmem>>, vector<4x256xf32>
    tpu.vector_store %arg6[%c20, %c0_22], %39 {strides = array<i32>} : memref<44x256xf32, #tpu.memory_space<vmem>>, vector<4x256xf32>,
    %c241_i32 = arith.constant 241 : i32
    %41 = tpu.dynamic_rotate %14 by %c241_i32 dim 1 : vector<4x256xf32>, i32 -> vector<4x256xf32>
    %c13 = arith.constant 13 : index
    %c0_23 = arith.constant 0 : index
    %42 = vector.load %arg4[%c13, %c0_23] : memref<20x256xf32, #tpu.memory_space<vmem>>, vector<1x256xf32>
    %43 = vector.broadcast %42 : vector<1x256xf32> to vector<4x256xf32>
    %44 = arith.mulf %41, %43 : vector<4x256xf32>
    %c24 = arith.constant 24 : index
    %c0_24 = arith.constant 0 : index
    %45 = vector.load %arg6[%c24, %c0_24] : memref<44x256xf32, #tpu.memory_space<vmem>>, vector<4x256xf32>
    tpu.vector_store %arg6[%c24, %c0_24], %44 {strides = array<i32>} : memref<44x256xf32, #tpu.memory_space<vmem>>, vector<4x256xf32>,
    %c240_i32 = arith.constant 240 : i32
    %46 = tpu.dynamic_rotate %14 by %c240_i32 dim 1 : vector<4x256xf32>, i32 -> vector<4x256xf32>
    %c14 = arith.constant 14 : index
    %c0_25 = arith.constant 0 : index
    %47 = vector.load %arg4[%c14, %c0_25] : memref<20x256xf32, #tpu.memory_space<vmem>>, vector<1x256xf32>
    %48 = vector.broadcast %47 : vector<1x256xf32> to vector<4x256xf32>
    %49 = arith.mulf %46, %48 : vector<4x256xf32>
    %c28 = arith.constant 28 : index
    %c0_26 = arith.constant 0 : index
    %50 = vector.load %arg6[%c28, %c0_26] : memref<44x256xf32, #tpu.memory_space<vmem>>, vector<4x256xf32>
    tpu.vector_store %arg6[%c28, %c0_26], %49 {strides = array<i32>} : memref<44x256xf32, #tpu.memory_space<vmem>>, vector<4x256xf32>,
    %c239_i32 = arith.constant 239 : i32
    %51 = tpu.dynamic_rotate %14 by %c239_i32 dim 1 : vector<4x256xf32>, i32 -> vector<4x256xf32>
    %c15 = arith.constant 15 : index
    %c0_27 = arith.constant 0 : index
    %52 = vector.load %arg4[%c15, %c0_27] : memref<20x256xf32, #tpu.memory_space<vmem>>, vector<1x256xf32>
    %53 = vector.broadcast %52 : vector<1x256xf32> to vector<4x256xf32>
    %54 = arith.mulf %51, %53 : vector<4x256xf32>
    %c32 = arith.constant 32 : index
    %c0_28 = arith.constant 0 : index
    %55 = vector.load %arg6[%c32, %c0_28] : memref<44x256xf32, #tpu.memory_space<vmem>>, vector<4x256xf32>
    tpu.vector_store %arg6[%c32, %c0_28], %54 {strides = array<i32>} : memref<44x256xf32, #tpu.memory_space<vmem>>, vector<4x256xf32>,
    %c20_29 = arith.constant 20 : index
    %c0_30 = arith.constant 0 : index
    %56 = vector.load %arg2[%c20_29, %c0_30] : memref<44x44xbf16, #tpu.memory_space<vmem>>, vector<4x36xbf16>
    %c0_31 = arith.constant 0 : index
    %c0_32 = arith.constant 0 : index
    %57 = vector.load %arg6[%c0_31, %c0_32] : memref<44x256xf32, #tpu.memory_space<vmem>>, vector<36x256xf32>
    %58 = arith.truncf %57 : vector<36x256xf32> to vector<36x256xbf16>
    %cst_33 = arith.constant dense<0.000000e+00> : vector<4x256xf32>
    %59 = tpu.matmul %56, %58, %cst_33 {dimension_numbers = #tpu.dot_dimension_numbers<[1], [0], [0], [1], [0, 0, 1, 1], [], []>} : vector<4x36xbf16>, vector<36x256xbf16>, vector<4x256xf32> -> vector<4x256xf32>
    %c20_34 = arith.constant 20 : index
    %c0_35 = arith.constant 0 : index
    %60 = vector.load %arg3[%c20_34, %c0_35] : memref<44x1xf32, #tpu.memory_space<vmem>>, vector<4x1xf32>
    %61 = vector.broadcast %60 : vector<4x1xf32> to vector<4x256xf32>
    %62 = arith.addf %59, %61 : vector<4x256xf32>
    %cst_36 = arith.constant 0.000000e+00 : f32
    %63 = vector.broadcast %cst_36 : f32 to vector<4x256xf32>
    %64 = arith.maximumf %62, %63 : vector<4x256xf32>
    %c0_37 = arith.constant 0 : index
    %c4_38 = arith.constant 4 : index
    %c0_39 = arith.constant 0 : index
    %65 = vector.load %arg5[%c0_37, %c4_38, %c0_39] : memref<1x20x256xf32, #tpu.memory_space<vmem>>, vector<1x4x256xf32>
    %66 = vector.shape_cast %65 : vector<1x4x256xf32> to vector<4x256xf32>
    %67 = vector.shape_cast %64 : vector<4x256xf32> to vector<1x4x256xf32>
    tpu.vector_store %arg5[%c0_37, %c4_38, %c0_39], %67 {strides = array<i32>} : memref<1x20x256xf32, #tpu.memory_space<vmem>>, vector<1x4x256xf32>,
    %68 = vector.extract_strided_slice %9 {offsets = [8, 0], sizes = [4, 256], strides = [1, 1]} : vector<20x256xf32> to vector<4x256xf32>
    %c32_i32 = arith.constant 32 : i32
    %69 = tpu.dynamic_rotate %68 by %c32_i32 dim 1 : vector<4x256xf32>, i32 -> vector<4x256xf32>
    %c3 = arith.constant 3 : index
    %c0_40 = arith.constant 0 : index
    %70 = vector.load %arg4[%c3, %c0_40] : memref<20x256xf32, #tpu.memory_space<vmem>>, vector<1x256xf32>
    %71 = vector.broadcast %70 : vector<1x256xf32> to vector<4x256xf32>
    %72 = arith.mulf %69, %71 : vector<4x256xf32>
    %c0_41 = arith.constant 0 : index
    %c0_42 = arith.constant 0 : index
    %73 = vector.load %arg6[%c0_41, %c0_42] : memref<44x256xf32, #tpu.memory_space<vmem>>, vector<4x256xf32>
    tpu.vector_store %arg6[%c0_41, %c0_42], %72 {strides = array<i32>} : memref<44x256xf32, #tpu.memory_space<vmem>>, vector<4x256xf32>,
    %c16_i32_43 = arith.constant 16 : i32
    %74 = tpu.dynamic_rotate %68 by %c16_i32_43 dim 1 : vector<4x256xf32>, i32 -> vector<4x256xf32>
    %c5_44 = arith.constant 5 : index
    %c0_45 = arith.constant 0 : index
    %75 = vector.load %arg4[%c5_44, %c0_45] : memref<20x256xf32, #tpu.memory_space<vmem>>, vector<1x256xf32>
    %76 = vector.broadcast %75 : vector<1x256xf32> to vector<4x256xf32>
    %77 = arith.mulf %74, %76 : vector<4x256xf32>
    %c4_46 = arith.constant 4 : index
    %c0_47 = arith.constant 0 : index
    %78 = vector.load %arg6[%c4_46, %c0_47] : memref<44x256xf32, #tpu.memory_space<vmem>>, vector<4x256xf32>
    tpu.vector_store %arg6[%c4_46, %c0_47], %77 {strides = array<i32>} : memref<44x256xf32, #tpu.memory_space<vmem>>, vector<4x256xf32>,
    %c8_48 = arith.constant 8 : index
    %c0_49 = arith.constant 0 : index
    %79 = vector.load %arg6[%c8_48, %c0_49] : memref<44x256xf32, #tpu.memory_space<vmem>>, vector<4x256xf32>
    tpu.vector_store %arg6[%c8_48, %c0_49], %68 {strides = array<i32>} : memref<44x256xf32, #tpu.memory_space<vmem>>, vector<4x256xf32>,
    %c240_i32_50 = arith.constant 240 : i32
    %80 = tpu.dynamic_rotate %68 by %c240_i32_50 dim 1 : vector<4x256xf32>, i32 -> vector<4x256xf32>
    %c14_51 = arith.constant 14 : index
    %c0_52 = arith.constant 0 : index
    %81 = vector.load %arg4[%c14_51, %c0_52] : memref<20x256xf32, #tpu.memory_space<vmem>>, vector<1x256xf32>
    %82 = vector.broadcast %81 : vector<1x256xf32> to vector<4x256xf32>
    %83 = arith.mulf %80, %82 : vector<4x256xf32>
    %c12_53 = arith.constant 12 : index
    %c0_54 = arith.constant 0 : index
    %84 = vector.load %arg6[%c12_53, %c0_54] : memref<44x256xf32, #tpu.memory_space<vmem>>, vector<4x256xf32>
    tpu.vector_store %arg6[%c12_53, %c0_54], %83 {strides = array<i32>} : memref<44x256xf32, #tpu.memory_space<vmem>>, vector<4x256xf32>,
    %c224_i32 = arith.constant 224 : i32
    %85 = tpu.dynamic_rotate %68 by %c224_i32 dim 1 : vector<4x256xf32>, i32 -> vector<4x256xf32>
    %c16_55 = arith.constant 16 : index
    %c0_56 = arith.constant 0 : index
    %86 = vector.load %arg4[%c16_55, %c0_56] : memref<20x256xf32, #tpu.memory_space<vmem>>, vector<1x256xf32>
    %87 = vector.broadcast %86 : vector<1x256xf32> to vector<4x256xf32>
    %88 = arith.mulf %85, %87 : vector<4x256xf32>
    %c16_57 = arith.constant 16 : index
    %c0_58 = arith.constant 0 : index
    %89 = vector.load %arg6[%c16_57, %c0_58] : memref<44x256xf32, #tpu.memory_space<vmem>>, vector<4x256xf32>
    tpu.vector_store %arg6[%c16_57, %c0_58], %88 {strides = array<i32>} : memref<44x256xf32, #tpu.memory_space<vmem>>, vector<4x256xf32>,
    %c24_59 = arith.constant 24 : index
    %c0_60 = arith.constant 0 : index
    %90 = vector.load %arg2[%c24_59, %c0_60] : memref<44x44xbf16, #tpu.memory_space<vmem>>, vector<4x20xbf16>
    %c0_61 = arith.constant 0 : index
    %c0_62 = arith.constant 0 : index
    %91 = vector.load %arg6[%c0_61, %c0_62] : memref<44x256xf32, #tpu.memory_space<vmem>>, vector<20x256xf32>
    %92 = arith.truncf %91 : vector<20x256xf32> to vector<20x256xbf16>
    %cst_63 = arith.constant dense<0.000000e+00> : vector<4x256xf32>
    %93 = tpu.matmul %90, %92, %cst_63 {dimension_numbers = #tpu.dot_dimension_numbers<[1], [0], [0], [1], [0, 0, 1, 1], [], []>} : vector<4x20xbf16>, vector<20x256xbf16>, vector<4x256xf32> -> vector<4x256xf32>
    %c24_64 = arith.constant 24 : index
    %c0_65 = arith.constant 0 : index
    %94 = vector.load %arg3[%c24_64, %c0_65] : memref<44x1xf32, #tpu.memory_space<vmem>>, vector<4x1xf32>
    %95 = vector.broadcast %94 : vector<4x1xf32> to vector<4x256xf32>
    %96 = arith.addf %93, %95 : vector<4x256xf32>
    %cst_66 = arith.constant 0.000000e+00 : f32
    %97 = vector.broadcast %cst_66 : f32 to vector<4x256xf32>
    %98 = arith.maximumf %96, %97 : vector<4x256xf32>
    %c2_i32 = arith.constant 2 : i32
    %99 = tpu.dynamic_rotate %98 by %c2_i32 dim 1 : vector<4x256xf32>, i32 -> vector<4x256xf32>
    %c8_67 = arith.constant 8 : index
    %c0_68 = arith.constant 0 : index
    %100 = vector.load %arg4[%c8_67, %c0_68] : memref<20x256xf32, #tpu.memory_space<vmem>>, vector<1x256xf32>
    %101 = vector.broadcast %100 : vector<1x256xf32> to vector<4x256xf32>
    %102 = arith.mulf %99, %101 : vector<4x256xf32>
    %c0_69 = arith.constant 0 : index
    %c0_70 = arith.constant 0 : index
    %103 = vector.load %arg6[%c0_69, %c0_70] : memref<44x256xf32, #tpu.memory_space<vmem>>, vector<4x256xf32>
    tpu.vector_store %arg6[%c0_69, %c0_70], %102 {strides = array<i32>} : memref<44x256xf32, #tpu.memory_space<vmem>>, vector<4x256xf32>,
    %c1_i32_71 = arith.constant 1 : i32
    %104 = tpu.dynamic_rotate %98 by %c1_i32_71 dim 1 : vector<4x256xf32>, i32 -> vector<4x256xf32>
    %c9_72 = arith.constant 9 : index
    %c0_73 = arith.constant 0 : index
    %105 = vector.load %arg4[%c9_72, %c0_73] : memref<20x256xf32, #tpu.memory_space<vmem>>, vector<1x256xf32>
    %106 = vector.broadcast %105 : vector<1x256xf32> to vector<4x256xf32>
    %107 = arith.mulf %104, %106 : vector<4x256xf32>
    %c4_74 = arith.constant 4 : index
    %c0_75 = arith.constant 0 : index
    %108 = vector.load %arg6[%c4_74, %c0_75] : memref<44x256xf32, #tpu.memory_space<vmem>>, vector<4x256xf32>
    tpu.vector_store %arg6[%c4_74, %c0_75], %107 {strides = array<i32>} : memref<44x256xf32, #tpu.memory_space<vmem>>, vector<4x256xf32>,
    %c8_76 = arith.constant 8 : index
    %c0_77 = arith.constant 0 : index
    %109 = vector.load %arg6[%c8_76, %c0_77] : memref<44x256xf32, #tpu.memory_space<vmem>>, vector<4x256xf32>
    tpu.vector_store %arg6[%c8_76, %c0_77], %98 {strides = array<i32>} : memref<44x256xf32, #tpu.memory_space<vmem>>, vector<4x256xf32>,
    %c255_i32_78 = arith.constant 255 : i32
    %110 = tpu.dynamic_rotate %98 by %c255_i32_78 dim 1 : vector<4x256xf32>, i32 -> vector<4x256xf32>
    %c10_79 = arith.constant 10 : index
    %c0_80 = arith.constant 0 : index
    %111 = vector.load %arg4[%c10_79, %c0_80] : memref<20x256xf32, #tpu.memory_space<vmem>>, vector<1x256xf32>
    %112 = vector.broadcast %111 : vector<1x256xf32> to vector<4x256xf32>
    %113 = arith.mulf %110, %112 : vector<4x256xf32>
    %c12_81 = arith.constant 12 : index
    %c0_82 = arith.constant 0 : index
    %114 = vector.load %arg6[%c12_81, %c0_82] : memref<44x256xf32, #tpu.memory_space<vmem>>, vector<4x256xf32>
    tpu.vector_store %arg6[%c12_81, %c0_82], %113 {strides = array<i32>} : memref<44x256xf32, #tpu.memory_space<vmem>>, vector<4x256xf32>,
    %c254_i32 = arith.constant 254 : i32
    %115 = tpu.dynamic_rotate %98 by %c254_i32 dim 1 : vector<4x256xf32>, i32 -> vector<4x256xf32>
    %c11 = arith.constant 11 : index
    %c0_83 = arith.constant 0 : index
    %116 = vector.load %arg4[%c11, %c0_83] : memref<20x256xf32, #tpu.memory_space<vmem>>, vector<1x256xf32>
    %117 = vector.broadcast %116 : vector<1x256xf32> to vector<4x256xf32>
    %118 = arith.mulf %115, %117 : vector<4x256xf32>
    %c16_84 = arith.constant 16 : index
    %c0_85 = arith.constant 0 : index
    %119 = vector.load %arg6[%c16_84, %c0_85] : memref<44x256xf32, #tpu.memory_space<vmem>>, vector<4x256xf32>
    tpu.vector_store %arg6[%c16_84, %c0_85], %118 {strides = array<i32>} : memref<44x256xf32, #tpu.memory_space<vmem>>, vector<4x256xf32>,
    %c28_86 = arith.constant 28 : index
    %c0_87 = arith.constant 0 : index
    %120 = vector.load %arg2[%c28_86, %c0_87] : memref<44x44xbf16, #tpu.memory_space<vmem>>, vector<4x20xbf16>
    %c0_88 = arith.constant 0 : index
    %c0_89 = arith.constant 0 : index
    %121 = vector.load %arg6[%c0_88, %c0_89] : memref<44x256xf32, #tpu.memory_space<vmem>>, vector<20x256xf32>
    %122 = arith.truncf %121 : vector<20x256xf32> to vector<20x256xbf16>
    %cst_90 = arith.constant dense<0.000000e+00> : vector<4x256xf32>
    %123 = tpu.matmul %120, %122, %cst_90 {dimension_numbers = #tpu.dot_dimension_numbers<[1], [0], [0], [1], [0, 0, 1, 1], [], []>} : vector<4x20xbf16>, vector<20x256xbf16>, vector<4x256xf32> -> vector<4x256xf32>
    %c28_91 = arith.constant 28 : index
    %c0_92 = arith.constant 0 : index
    %124 = vector.load %arg3[%c28_91, %c0_92] : memref<44x1xf32, #tpu.memory_space<vmem>>, vector<4x1xf32>
    %125 = vector.broadcast %124 : vector<4x1xf32> to vector<4x256xf32>
    %126 = arith.addf %123, %125 : vector<4x256xf32>
    %cst_93 = arith.constant 0.000000e+00 : f32
    %127 = vector.broadcast %cst_93 : f32 to vector<4x256xf32>
    %128 = arith.maximumf %126, %127 : vector<4x256xf32>
    %c0_94 = arith.constant 0 : index
    %c8_95 = arith.constant 8 : index
    %c0_96 = arith.constant 0 : index
    %129 = vector.load %arg5[%c0_94, %c8_95, %c0_96] : memref<1x20x256xf32, #tpu.memory_space<vmem>>, vector<1x4x256xf32>
    %130 = vector.shape_cast %129 : vector<1x4x256xf32> to vector<4x256xf32>
    %131 = vector.shape_cast %128 : vector<4x256xf32> to vector<1x4x256xf32>
    tpu.vector_store %arg5[%c0_94, %c8_95, %c0_96], %131 {strides = array<i32>} : memref<1x20x256xf32, #tpu.memory_space<vmem>>, vector<1x4x256xf32>,
    %132 = vector.extract_strided_slice %9 {offsets = [12, 0], sizes = [4, 256], strides = [1, 1]} : vector<20x256xf32> to vector<4x256xf32>
    %c48_i32 = arith.constant 48 : i32
    %133 = tpu.dynamic_rotate %132 by %c48_i32 dim 1 : vector<4x256xf32>, i32 -> vector<4x256xf32>
    %c2 = arith.constant 2 : index
    %c0_97 = arith.constant 0 : index
    %134 = vector.load %arg4[%c2, %c0_97] : memref<20x256xf32, #tpu.memory_space<vmem>>, vector<1x256xf32>
    %135 = vector.broadcast %134 : vector<1x256xf32> to vector<4x256xf32>
    %136 = arith.mulf %133, %135 : vector<4x256xf32>
    %c0_98 = arith.constant 0 : index
    %c0_99 = arith.constant 0 : index
    %137 = vector.load %arg6[%c0_98, %c0_99] : memref<44x256xf32, #tpu.memory_space<vmem>>, vector<4x256xf32>
    tpu.vector_store %arg6[%c0_98, %c0_99], %136 {strides = array<i32>} : memref<44x256xf32, #tpu.memory_space<vmem>>, vector<4x256xf32>,
    %c32_i32_100 = arith.constant 32 : i32
    %138 = tpu.dynamic_rotate %132 by %c32_i32_100 dim 1 : vector<4x256xf32>, i32 -> vector<4x256xf32>
    %c3_101 = arith.constant 3 : index
    %c0_102 = arith.constant 0 : index
    %139 = vector.load %arg4[%c3_101, %c0_102] : memref<20x256xf32, #tpu.memory_space<vmem>>, vector<1x256xf32>
    %140 = vector.broadcast %139 : vector<1x256xf32> to vector<4x256xf32>
    %141 = arith.mulf %138, %140 : vector<4x256xf32>
    %c4_103 = arith.constant 4 : index
    %c0_104 = arith.constant 0 : index
    %142 = vector.load %arg6[%c4_103, %c0_104] : memref<44x256xf32, #tpu.memory_space<vmem>>, vector<4x256xf32>
    tpu.vector_store %arg6[%c4_103, %c0_104], %141 {strides = array<i32>} : memref<44x256xf32, #tpu.memory_space<vmem>>, vector<4x256xf32>,
    %c16_i32_105 = arith.constant 16 : i32
    %143 = tpu.dynamic_rotate %132 by %c16_i32_105 dim 1 : vector<4x256xf32>, i32 -> vector<4x256xf32>
    %c5_106 = arith.constant 5 : index
    %c0_107 = arith.constant 0 : index
    %144 = vector.load %arg4[%c5_106, %c0_107] : memref<20x256xf32, #tpu.memory_space<vmem>>, vector<1x256xf32>
    %145 = vector.broadcast %144 : vector<1x256xf32> to vector<4x256xf32>
    %146 = arith.mulf %143, %145 : vector<4x256xf32>
    %c8_108 = arith.constant 8 : index
    %c0_109 = arith.constant 0 : index
    %147 = vector.load %arg6[%c8_108, %c0_109] : memref<44x256xf32, #tpu.memory_space<vmem>>, vector<4x256xf32>
    tpu.vector_store %arg6[%c8_108, %c0_109], %146 {strides = array<i32>} : memref<44x256xf32, #tpu.memory_space<vmem>>, vector<4x256xf32>,
    %c12_110 = arith.constant 12 : index
    %c0_111 = arith.constant 0 : index
    %148 = vector.load %arg6[%c12_110, %c0_111] : memref<44x256xf32, #tpu.memory_space<vmem>>, vector<4x256xf32>
    tpu.vector_store %arg6[%c12_110, %c0_111], %132 {strides = array<i32>} : memref<44x256xf32, #tpu.memory_space<vmem>>, vector<4x256xf32>,
    %c240_i32_112 = arith.constant 240 : i32
    %149 = tpu.dynamic_rotate %132 by %c240_i32_112 dim 1 : vector<4x256xf32>, i32 -> vector<4x256xf32>
    %c14_113 = arith.constant 14 : index
    %c0_114 = arith.constant 0 : index
    %150 = vector.load %arg4[%c14_113, %c0_114] : memref<20x256xf32, #tpu.memory_space<vmem>>, vector<1x256xf32>
    %151 = vector.broadcast %150 : vector<1x256xf32> to vector<4x256xf32>
    %152 = arith.mulf %149, %151 : vector<4x256xf32>
    %c16_115 = arith.constant 16 : index
    %c0_116 = arith.constant 0 : index
    %153 = vector.load %arg6[%c16_115, %c0_116] : memref<44x256xf32, #tpu.memory_space<vmem>>, vector<4x256xf32>
    tpu.vector_store %arg6[%c16_115, %c0_116], %152 {strides = array<i32>} : memref<44x256xf32, #tpu.memory_space<vmem>>, vector<4x256xf32>,
    %c224_i32_117 = arith.constant 224 : i32
    %154 = tpu.dynamic_rotate %132 by %c224_i32_117 dim 1 : vector<4x256xf32>, i32 -> vector<4x256xf32>
    %c16_118 = arith.constant 16 : index
    %c0_119 = arith.constant 0 : index
    %155 = vector.load %arg4[%c16_118, %c0_119] : memref<20x256xf32, #tpu.memory_space<vmem>>, vector<1x256xf32>
    %156 = vector.broadcast %155 : vector<1x256xf32> to vector<4x256xf32>
    %157 = arith.mulf %154, %156 : vector<4x256xf32>
    %c20_120 = arith.constant 20 : index
    %c0_121 = arith.constant 0 : index
    %158 = vector.load %arg6[%c20_120, %c0_121] : memref<44x256xf32, #tpu.memory_space<vmem>>, vector<4x256xf32>
    tpu.vector_store %arg6[%c20_120, %c0_121], %157 {strides = array<i32>} : memref<44x256xf32, #tpu.memory_space<vmem>>, vector<4x256xf32>,
    %c208_i32 = arith.constant 208 : i32
    %159 = tpu.dynamic_rotate %132 by %c208_i32 dim 1 : vector<4x256xf32>, i32 -> vector<4x256xf32>
    %c17 = arith.constant 17 : index
    %c0_122 = arith.constant 0 : index
    %160 = vector.load %arg4[%c17, %c0_122] : memref<20x256xf32, #tpu.memory_space<vmem>>, vector<1x256xf32>
    %161 = vector.broadcast %160 : vector<1x256xf32> to vector<4x256xf32>
    %162 = arith.mulf %159, %161 : vector<4x256xf32>
    %c24_123 = arith.constant 24 : index
    %c0_124 = arith.constant 0 : index
    %163 = vector.load %arg6[%c24_123, %c0_124] : memref<44x256xf32, #tpu.memory_space<vmem>>, vector<4x256xf32>
    tpu.vector_store %arg6[%c24_123, %c0_124], %162 {strides = array<i32>} : memref<44x256xf32, #tpu.memory_space<vmem>>, vector<4x256xf32>,
    %c32_125 = arith.constant 32 : index
    %c0_126 = arith.constant 0 : index
    %164 = vector.load %arg2[%c32_125, %c0_126] : memref<44x44xbf16, #tpu.memory_space<vmem>>, vector<4x28xbf16>
    %c0_127 = arith.constant 0 : index
    %c0_128 = arith.constant 0 : index
    %165 = vector.load %arg6[%c0_127, %c0_128] : memref<44x256xf32, #tpu.memory_space<vmem>>, vector<28x256xf32>
    %166 = arith.truncf %165 : vector<28x256xf32> to vector<28x256xbf16>
    %cst_129 = arith.constant dense<0.000000e+00> : vector<4x256xf32>
    %167 = tpu.matmul %164, %166, %cst_129 {dimension_numbers = #tpu.dot_dimension_numbers<[1], [0], [0], [1], [0, 0, 1, 1], [], []>} : vector<4x28xbf16>, vector<28x256xbf16>, vector<4x256xf32> -> vector<4x256xf32>
    %c32_130 = arith.constant 32 : index
    %c0_131 = arith.constant 0 : index
    %168 = vector.load %arg3[%c32_130, %c0_131] : memref<44x1xf32, #tpu.memory_space<vmem>>, vector<4x1xf32>
    %169 = vector.broadcast %168 : vector<4x1xf32> to vector<4x256xf32>
    %170 = arith.addf %167, %169 : vector<4x256xf32>
    %cst_132 = arith.constant 0.000000e+00 : f32
    %171 = vector.broadcast %cst_132 : f32 to vector<4x256xf32>
    %172 = arith.maximumf %170, %171 : vector<4x256xf32>
    %c3_i32 = arith.constant 3 : i32
    %173 = tpu.dynamic_rotate %172 by %c3_i32 dim 1 : vector<4x256xf32>, i32 -> vector<4x256xf32>
    %c7 = arith.constant 7 : index
    %c0_133 = arith.constant 0 : index
    %174 = vector.load %arg4[%c7, %c0_133] : memref<20x256xf32, #tpu.memory_space<vmem>>, vector<1x256xf32>
    %175 = vector.broadcast %174 : vector<1x256xf32> to vector<4x256xf32>
    %176 = arith.mulf %173, %175 : vector<4x256xf32>
    %c0_134 = arith.constant 0 : index
    %c0_135 = arith.constant 0 : index
    %177 = vector.load %arg6[%c0_134, %c0_135] : memref<44x256xf32, #tpu.memory_space<vmem>>, vector<4x256xf32>
    tpu.vector_store %arg6[%c0_134, %c0_135], %176 {strides = array<i32>} : memref<44x256xf32, #tpu.memory_space<vmem>>, vector<4x256xf32>,
    %c2_i32_136 = arith.constant 2 : i32
    %178 = tpu.dynamic_rotate %172 by %c2_i32_136 dim 1 : vector<4x256xf32>, i32 -> vector<4x256xf32>
    %c8_137 = arith.constant 8 : index
    %c0_138 = arith.constant 0 : index
    %179 = vector.load %arg4[%c8_137, %c0_138] : memref<20x256xf32, #tpu.memory_space<vmem>>, vector<1x256xf32>
    %180 = vector.broadcast %179 : vector<1x256xf32> to vector<4x256xf32>
    %181 = arith.mulf %178, %180 : vector<4x256xf32>
    %c4_139 = arith.constant 4 : index
    %c0_140 = arith.constant 0 : index
    %182 = vector.load %arg6[%c4_139, %c0_140] : memref<44x256xf32, #tpu.memory_space<vmem>>, vector<4x256xf32>
    tpu.vector_store %arg6[%c4_139, %c0_140], %181 {strides = array<i32>} : memref<44x256xf32, #tpu.memory_space<vmem>>, vector<4x256xf32>,
    %c1_i32_141 = arith.constant 1 : i32
    %183 = tpu.dynamic_rotate %172 by %c1_i32_141 dim 1 : vector<4x256xf32>, i32 -> vector<4x256xf32>
    %c9_142 = arith.constant 9 : index
    %c0_143 = arith.constant 0 : index
    %184 = vector.load %arg4[%c9_142, %c0_143] : memref<20x256xf32, #tpu.memory_space<vmem>>, vector<1x256xf32>
    %185 = vector.broadcast %184 : vector<1x256xf32> to vector<4x256xf32>
    %186 = arith.mulf %183, %185 : vector<4x256xf32>
    %c8_144 = arith.constant 8 : index
    %c0_145 = arith.constant 0 : index
    %187 = vector.load %arg6[%c8_144, %c0_145] : memref<44x256xf32, #tpu.memory_space<vmem>>, vector<4x256xf32>
    tpu.vector_store %arg6[%c8_144, %c0_145], %186 {strides = array<i32>} : memref<44x256xf32, #tpu.memory_space<vmem>>, vector<4x256xf32>,
    %c12_146 = arith.constant 12 : index
    %c0_147 = arith.constant 0 : index
    %188 = vector.load %arg6[%c12_146, %c0_147] : memref<44x256xf32, #tpu.memory_space<vmem>>, vector<4x256xf32>
    tpu.vector_store %arg6[%c12_146, %c0_147], %172 {strides = array<i32>} : memref<44x256xf32, #tpu.memory_space<vmem>>, vector<4x256xf32>,
    %c255_i32_148 = arith.constant 255 : i32
    %189 = tpu.dynamic_rotate %172 by %c255_i32_148 dim 1 : vector<4x256xf32>, i32 -> vector<4x256xf32>
    %c10_149 = arith.constant 10 : index
    %c0_150 = arith.constant 0 : index
    %190 = vector.load %arg4[%c10_149, %c0_150] : memref<20x256xf32, #tpu.memory_space<vmem>>, vector<1x256xf32>
    %191 = vector.broadcast %190 : vector<1x256xf32> to vector<4x256xf32>
    %192 = arith.mulf %189, %191 : vector<4x256xf32>
    %c16_151 = arith.constant 16 : index
    %c0_152 = arith.constant 0 : index
    %193 = vector.load %arg6[%c16_151, %c0_152] : memref<44x256xf32, #tpu.memory_space<vmem>>, vector<4x256xf32>
    tpu.vector_store %arg6[%c16_151, %c0_152], %192 {strides = array<i32>} : memref<44x256xf32, #tpu.memory_space<vmem>>, vector<4x256xf32>,
    %c254_i32_153 = arith.constant 254 : i32
    %194 = tpu.dynamic_rotate %172 by %c254_i32_153 dim 1 : vector<4x256xf32>, i32 -> vector<4x256xf32>
    %c11_154 = arith.constant 11 : index
    %c0_155 = arith.constant 0 : index
    %195 = vector.load %arg4[%c11_154, %c0_155] : memref<20x256xf32, #tpu.memory_space<vmem>>, vector<1x256xf32>
    %196 = vector.broadcast %195 : vector<1x256xf32> to vector<4x256xf32>
    %197 = arith.mulf %194, %196 : vector<4x256xf32>
    %c20_156 = arith.constant 20 : index
    %c0_157 = arith.constant 0 : index
    %198 = vector.load %arg6[%c20_156, %c0_157] : memref<44x256xf32, #tpu.memory_space<vmem>>, vector<4x256xf32>
    tpu.vector_store %arg6[%c20_156, %c0_157], %197 {strides = array<i32>} : memref<44x256xf32, #tpu.memory_space<vmem>>, vector<4x256xf32>,
    %c253_i32 = arith.constant 253 : i32
    %199 = tpu.dynamic_rotate %172 by %c253_i32 dim 1 : vector<4x256xf32>, i32 -> vector<4x256xf32>
    %c12_158 = arith.constant 12 : index
    %c0_159 = arith.constant 0 : index
    %200 = vector.load %arg4[%c12_158, %c0_159] : memref<20x256xf32, #tpu.memory_space<vmem>>, vector<1x256xf32>
    %201 = vector.broadcast %200 : vector<1x256xf32> to vector<4x256xf32>
    %202 = arith.mulf %199, %201 : vector<4x256xf32>
    %c24_160 = arith.constant 24 : index
    %c0_161 = arith.constant 0 : index
    %203 = vector.load %arg6[%c24_160, %c0_161] : memref<44x256xf32, #tpu.memory_space<vmem>>, vector<4x256xf32>
    tpu.vector_store %arg6[%c24_160, %c0_161], %202 {strides = array<i32>} : memref<44x256xf32, #tpu.memory_space<vmem>>, vector<4x256xf32>,
    %c36 = arith.constant 36 : index
    %c0_162 = arith.constant 0 : index
    %204 = vector.load %arg2[%c36, %c0_162] : memref<44x44xbf16, #tpu.memory_space<vmem>>, vector<4x28xbf16>
    %c0_163 = arith.constant 0 : index
    %c0_164 = arith.constant 0 : index
    %205 = vector.load %arg6[%c0_163, %c0_164] : memref<44x256xf32, #tpu.memory_space<vmem>>, vector<28x256xf32>
    %206 = arith.truncf %205 : vector<28x256xf32> to vector<28x256xbf16>
    %cst_165 = arith.constant dense<0.000000e+00> : vector<4x256xf32>
    %207 = tpu.matmul %204, %206, %cst_165 {dimension_numbers = #tpu.dot_dimension_numbers<[1], [0], [0], [1], [0, 0, 1, 1], [], []>} : vector<4x28xbf16>, vector<28x256xbf16>, vector<4x256xf32> -> vector<4x256xf32>
    %c36_166 = arith.constant 36 : index
    %c0_167 = arith.constant 0 : index
    %208 = vector.load %arg3[%c36_166, %c0_167] : memref<44x1xf32, #tpu.memory_space<vmem>>, vector<4x1xf32>
    %209 = vector.broadcast %208 : vector<4x1xf32> to vector<4x256xf32>
    %210 = arith.addf %207, %209 : vector<4x256xf32>
    %cst_168 = arith.constant 0.000000e+00 : f32
    %211 = vector.broadcast %cst_168 : f32 to vector<4x256xf32>
    %212 = arith.maximumf %210, %211 : vector<4x256xf32>
    %c0_169 = arith.constant 0 : index
    %c12_170 = arith.constant 12 : index
    %c0_171 = arith.constant 0 : index
    %213 = vector.load %arg5[%c0_169, %c12_170, %c0_171] : memref<1x20x256xf32, #tpu.memory_space<vmem>>, vector<1x4x256xf32>
    %214 = vector.shape_cast %213 : vector<1x4x256xf32> to vector<4x256xf32>
    %215 = vector.shape_cast %212 : vector<4x256xf32> to vector<1x4x256xf32>
    tpu.vector_store %arg5[%c0_169, %c12_170, %c0_171], %215 {strides = array<i32>} : memref<1x20x256xf32, #tpu.memory_space<vmem>>, vector<1x4x256xf32>,
    %216 = vector.extract_strided_slice %9 {offsets = [16, 0], sizes = [4, 256], strides = [1, 1]} : vector<20x256xf32> to vector<4x256xf32>
    %c80_i32 = arith.constant 80 : i32
    %217 = tpu.dynamic_rotate %216 by %c80_i32 dim 1 : vector<4x256xf32>, i32 -> vector<4x256xf32>
    %c0_172 = arith.constant 0 : index
    %c0_173 = arith.constant 0 : index
    %218 = vector.load %arg4[%c0_172, %c0_173] : memref<20x256xf32, #tpu.memory_space<vmem>>, vector<1x256xf32>
    %219 = vector.broadcast %218 : vector<1x256xf32> to vector<4x256xf32>
    %220 = arith.mulf %217, %219 : vector<4x256xf32>
    %c0_174 = arith.constant 0 : index
    %c0_175 = arith.constant 0 : index
    %221 = vector.load %arg6[%c0_174, %c0_175] : memref<44x256xf32, #tpu.memory_space<vmem>>, vector<4x256xf32>
    tpu.vector_store %arg6[%c0_174, %c0_175], %220 {strides = array<i32>} : memref<44x256xf32, #tpu.memory_space<vmem>>, vector<4x256xf32>,
    %c64_i32 = arith.constant 64 : i32
    %222 = tpu.dynamic_rotate %216 by %c64_i32 dim 1 : vector<4x256xf32>, i32 -> vector<4x256xf32>
    %c1 = arith.constant 1 : index
    %c0_176 = arith.constant 0 : index
    %223 = vector.load %arg4[%c1, %c0_176] : memref<20x256xf32, #tpu.memory_space<vmem>>, vector<1x256xf32>
    %224 = vector.broadcast %223 : vector<1x256xf32> to vector<4x256xf32>
    %225 = arith.mulf %222, %224 : vector<4x256xf32>
    %c4_177 = arith.constant 4 : index
    %c0_178 = arith.constant 0 : index
    %226 = vector.load %arg6[%c4_177, %c0_178] : memref<44x256xf32, #tpu.memory_space<vmem>>, vector<4x256xf32>
    tpu.vector_store %arg6[%c4_177, %c0_178], %225 {strides = array<i32>} : memref<44x256xf32, #tpu.memory_space<vmem>>, vector<4x256xf32>,
    %c48_i32_179 = arith.constant 48 : i32
    %227 = tpu.dynamic_rotate %216 by %c48_i32_179 dim 1 : vector<4x256xf32>, i32 -> vector<4x256xf32>
    %c2_180 = arith.constant 2 : index
    %c0_181 = arith.constant 0 : index
    %228 = vector.load %arg4[%c2_180, %c0_181] : memref<20x256xf32, #tpu.memory_space<vmem>>, vector<1x256xf32>
    %229 = vector.broadcast %228 : vector<1x256xf32> to vector<4x256xf32>
    %230 = arith.mulf %227, %229 : vector<4x256xf32>
    %c8_182 = arith.constant 8 : index
    %c0_183 = arith.constant 0 : index
    %231 = vector.load %arg6[%c8_182, %c0_183] : memref<44x256xf32, #tpu.memory_space<vmem>>, vector<4x256xf32>
    tpu.vector_store %arg6[%c8_182, %c0_183], %230 {strides = array<i32>} : memref<44x256xf32, #tpu.memory_space<vmem>>, vector<4x256xf32>,
    %c32_i32_184 = arith.constant 32 : i32
    %232 = tpu.dynamic_rotate %216 by %c32_i32_184 dim 1 : vector<4x256xf32>, i32 -> vector<4x256xf32>
    %c3_185 = arith.constant 3 : index
    %c0_186 = arith.constant 0 : index
    %233 = vector.load %arg4[%c3_185, %c0_186] : memref<20x256xf32, #tpu.memory_space<vmem>>, vector<1x256xf32>
    %234 = vector.broadcast %233 : vector<1x256xf32> to vector<4x256xf32>
    %235 = arith.mulf %232, %234 : vector<4x256xf32>
    %c12_187 = arith.constant 12 : index
    %c0_188 = arith.constant 0 : index
    %236 = vector.load %arg6[%c12_187, %c0_188] : memref<44x256xf32, #tpu.memory_space<vmem>>, vector<4x256xf32>
    tpu.vector_store %arg6[%c12_187, %c0_188], %235 {strides = array<i32>} : memref<44x256xf32, #tpu.memory_space<vmem>>, vector<4x256xf32>,
    %c16_i32_189 = arith.constant 16 : i32
    %237 = tpu.dynamic_rotate %216 by %c16_i32_189 dim 1 : vector<4x256xf32>, i32 -> vector<4x256xf32>
    %c5_190 = arith.constant 5 : index
    %c0_191 = arith.constant 0 : index
    %238 = vector.load %arg4[%c5_190, %c0_191] : memref<20x256xf32, #tpu.memory_space<vmem>>, vector<1x256xf32>
    %239 = vector.broadcast %238 : vector<1x256xf32> to vector<4x256xf32>
    %240 = arith.mulf %237, %239 : vector<4x256xf32>
    %c16_192 = arith.constant 16 : index
    %c0_193 = arith.constant 0 : index
    %241 = vector.load %arg6[%c16_192, %c0_193] : memref<44x256xf32, #tpu.memory_space<vmem>>, vector<4x256xf32>
    tpu.vector_store %arg6[%c16_192, %c0_193], %240 {strides = array<i32>} : memref<44x256xf32, #tpu.memory_space<vmem>>, vector<4x256xf32>,
    %c20_194 = arith.constant 20 : index
    %c0_195 = arith.constant 0 : index
    %242 = vector.load %arg6[%c20_194, %c0_195] : memref<44x256xf32, #tpu.memory_space<vmem>>, vector<4x256xf32>
    tpu.vector_store %arg6[%c20_194, %c0_195], %216 {strides = array<i32>} : memref<44x256xf32, #tpu.memory_space<vmem>>, vector<4x256xf32>,
    %c240_i32_196 = arith.constant 240 : i32
    %243 = tpu.dynamic_rotate %216 by %c240_i32_196 dim 1 : vector<4x256xf32>, i32 -> vector<4x256xf32>
    %c14_197 = arith.constant 14 : index
    %c0_198 = arith.constant 0 : index
    %244 = vector.load %arg4[%c14_197, %c0_198] : memref<20x256xf32, #tpu.memory_space<vmem>>, vector<1x256xf32>
    %245 = vector.broadcast %244 : vector<1x256xf32> to vector<4x256xf32>
    %246 = arith.mulf %243, %245 : vector<4x256xf32>
    %c24_199 = arith.constant 24 : index
    %c0_200 = arith.constant 0 : index
    %247 = vector.load %arg6[%c24_199, %c0_200] : memref<44x256xf32, #tpu.memory_space<vmem>>, vector<4x256xf32>
    tpu.vector_store %arg6[%c24_199, %c0_200], %246 {strides = array<i32>} : memref<44x256xf32, #tpu.memory_space<vmem>>, vector<4x256xf32>,
    %c224_i32_201 = arith.constant 224 : i32
    %248 = tpu.dynamic_rotate %216 by %c224_i32_201 dim 1 : vector<4x256xf32>, i32 -> vector<4x256xf32>
    %c16_202 = arith.constant 16 : index
    %c0_203 = arith.constant 0 : index
    %249 = vector.load %arg4[%c16_202, %c0_203] : memref<20x256xf32, #tpu.memory_space<vmem>>, vector<1x256xf32>
    %250 = vector.broadcast %249 : vector<1x256xf32> to vector<4x256xf32>
    %251 = arith.mulf %248, %250 : vector<4x256xf32>
    %c28_204 = arith.constant 28 : index
    %c0_205 = arith.constant 0 : index
    %252 = vector.load %arg6[%c28_204, %c0_205] : memref<44x256xf32, #tpu.memory_space<vmem>>, vector<4x256xf32>
    tpu.vector_store %arg6[%c28_204, %c0_205], %251 {strides = array<i32>} : memref<44x256xf32, #tpu.memory_space<vmem>>, vector<4x256xf32>,
    %c208_i32_206 = arith.constant 208 : i32
    %253 = tpu.dynamic_rotate %216 by %c208_i32_206 dim 1 : vector<4x256xf32>, i32 -> vector<4x256xf32>
    %c17_207 = arith.constant 17 : index
    %c0_208 = arith.constant 0 : index
    %254 = vector.load %arg4[%c17_207, %c0_208] : memref<20x256xf32, #tpu.memory_space<vmem>>, vector<1x256xf32>
    %255 = vector.broadcast %254 : vector<1x256xf32> to vector<4x256xf32>
    %256 = arith.mulf %253, %255 : vector<4x256xf32>
    %c32_209 = arith.constant 32 : index
    %c0_210 = arith.constant 0 : index
    %257 = vector.load %arg6[%c32_209, %c0_210] : memref<44x256xf32, #tpu.memory_space<vmem>>, vector<4x256xf32>
    tpu.vector_store %arg6[%c32_209, %c0_210], %256 {strides = array<i32>} : memref<44x256xf32, #tpu.memory_space<vmem>>, vector<4x256xf32>,
    %c192_i32 = arith.constant 192 : i32
    %258 = tpu.dynamic_rotate %216 by %c192_i32 dim 1 : vector<4x256xf32>, i32 -> vector<4x256xf32>
    %c18 = arith.constant 18 : index
    %c0_211 = arith.constant 0 : index
    %259 = vector.load %arg4[%c18, %c0_211] : memref<20x256xf32, #tpu.memory_space<vmem>>, vector<1x256xf32>
    %260 = vector.broadcast %259 : vector<1x256xf32> to vector<4x256xf32>
    %261 = arith.mulf %258, %260 : vector<4x256xf32>
    %c36_212 = arith.constant 36 : index
    %c0_213 = arith.constant 0 : index
    %262 = vector.load %arg6[%c36_212, %c0_213] : memref<44x256xf32, #tpu.memory_space<vmem>>, vector<4x256xf32>
    tpu.vector_store %arg6[%c36_212, %c0_213], %261 {strides = array<i32>} : memref<44x256xf32, #tpu.memory_space<vmem>>, vector<4x256xf32>,
    %c176_i32 = arith.constant 176 : i32
    %263 = tpu.dynamic_rotate %216 by %c176_i32 dim 1 : vector<4x256xf32>, i32 -> vector<4x256xf32>
    %c19 = arith.constant 19 : index
    %c0_214 = arith.constant 0 : index
    %264 = vector.load %arg4[%c19, %c0_214] : memref<20x256xf32, #tpu.memory_space<vmem>>, vector<1x256xf32>
    %265 = vector.broadcast %264 : vector<1x256xf32> to vector<4x256xf32>
    %266 = arith.mulf %263, %265 : vector<4x256xf32>
    %c40 = arith.constant 40 : index
    %c0_215 = arith.constant 0 : index
    %267 = vector.load %arg6[%c40, %c0_215] : memref<44x256xf32, #tpu.memory_space<vmem>>, vector<4x256xf32>
    tpu.vector_store %arg6[%c40, %c0_215], %266 {strides = array<i32>} : memref<44x256xf32, #tpu.memory_space<vmem>>, vector<4x256xf32>,
    %c40_216 = arith.constant 40 : index
    %c0_217 = arith.constant 0 : index
    %268 = vector.load %arg2[%c40_216, %c0_217] : memref<44x44xbf16, #tpu.memory_space<vmem>>, vector<4x44xbf16>
    %c0_218 = arith.constant 0 : index
    %c0_219 = arith.constant 0 : index
    %269 = vector.load %arg6[%c0_218, %c0_219] : memref<44x256xf32, #tpu.memory_space<vmem>>, vector<44x256xf32>
    %270 = arith.truncf %269 : vector<44x256xf32> to vector<44x256xbf16>
    %cst_220 = arith.constant dense<0.000000e+00> : vector<4x256xf32>
    %271 = tpu.matmul %268, %270, %cst_220 {dimension_numbers = #tpu.dot_dimension_numbers<[1], [0], [0], [1], [0, 0, 1, 1], [], []>} : vector<4x44xbf16>, vector<44x256xbf16>, vector<4x256xf32> -> vector<4x256xf32>
    %c40_221 = arith.constant 40 : index
    %c0_222 = arith.constant 0 : index
    %272 = vector.load %arg3[%c40_221, %c0_222] : memref<44x1xf32, #tpu.memory_space<vmem>>, vector<4x1xf32>
    %273 = vector.broadcast %272 : vector<4x1xf32> to vector<4x256xf32>
    %274 = arith.addf %271, %273 : vector<4x256xf32>
    %cst_223 = arith.constant 0.000000e+00 : f32
    %275 = vector.broadcast %cst_223 : f32 to vector<4x256xf32>
    %276 = arith.maximumf %274, %275 : vector<4x256xf32>
    %c0_224 = arith.constant 0 : index
    %c16_225 = arith.constant 16 : index
    %c0_226 = arith.constant 0 : index
    %277 = vector.load %arg5[%c0_224, %c16_225, %c0_226] : memref<1x20x256xf32, #tpu.memory_space<vmem>>, vector<1x4x256xf32>
    %278 = vector.shape_cast %277 : vector<1x4x256xf32> to vector<4x256xf32>
    %279 = vector.shape_cast %276 : vector<4x256xf32> to vector<1x4x256xf32>
    tpu.vector_store %arg5[%c0_224, %c16_225, %c0_226], %279 {strides = array<i32>} : memref<1x20x256xf32, #tpu.memory_space<vmem>>, vector<1x4x256xf32>,
    return
  }
  func.func @transform_0(%arg0: i32) -> (i32, i32, i32) {
    %c0_i32 = arith.constant 0 : i32
    %c0_i32_0 = arith.constant 0 : i32
    %c0_i32_1 = arith.constant 0 : i32
    return %arg0, %c0_i32, %c0_i32_0 : i32, i32, i32
  }
  func.func @transform_1(%arg0: i32) -> (i32, i32) {
    %c0_i32 = arith.constant 0 : i32
    %c0_i32_0 = arith.constant 0 : i32
    %c0_i32_1 = arith.constant 0 : i32
    return %c0_i32, %c0_i32_0 : i32, i32
  }
  func.func @transform_2(%arg0: i32) -> (i32, i32) {
    %c0_i32 = arith.constant 0 : i32
    %c0_i32_0 = arith.constant 0 : i32
    %c0_i32_1 = arith.constant 0 : i32
    return %c0_i32, %c0_i32_0 : i32, i32
  }
  func.func @transform_3(%arg0: i32) -> (i32, i32) {
    %c0_i32 = arith.constant 0 : i32
    %c0_i32_0 = arith.constant 0 : i32
    %c0_i32_1 = arith.constant 0 : i32
    return %c0_i32, %c0_i32_0 : i32, i32
  }
  func.func @transform_4(%arg0: i32) -> (i32, i32, i32) {
    %c0_i32 = arith.constant 0 : i32
    %c0_i32_0 = arith.constant 0 : i32
    %c0_i32_1 = arith.constant 0 : i32
    return %arg0, %c0_i32, %c0_i32_0 : i32, i32, i32
  }
}

</mosaic_0001>

<llo_original>
// kernel: msst_forward.1
$region0: #{msst_forward.1}
  #allocation0 [shape = 'u32[]', space=smem, size = 0x4, offset = 0x4, fixed_abs, tag = 'smem constant byte address 0x4 - core index']
  #allocation1 [shape = 'u32[72,128]{1,0:T(1,128)}', space=vmem, size = 0x9000, scoped, tag = 'internal scratch']
  #allocation2 [shape = 'f32[44,256]{1,0:T(8,128)}', space=vmem, size = 0xc000, scoped, tag = 'scratch operand']
  %s0 = inlined_call_operand.vmem [shape: f32[2,4,256], index: 0, kind: input, shape index: {}]
  %s1 = inlined_call_operand.vmem [shape: bf16[44,44], index: 1, kind: input, shape index: {}]
  %s2 = inlined_call_operand.vmem [shape: f32[44,1], index: 2, kind: input, shape index: {}]
  %s3 = inlined_call_operand.vmem [shape: f32[20,256], index: 3, kind: input, shape index: {}]
  %s4 = inlined_call_operand.vmem [shape: f32[2,20,256], index: 4, kind: output, shape index: {}]
  %s5 = sld [smem:[#allocation0]]
  $region49: #{msst_forward.1} parent=0
    _
  %s7 = ssub.s32 1, %s5
  %s8 = scalar_select 0, %s7, %s5
  loop: start=0, step=1, limit=4
  $region2: #{msst_forward.1} parent=0 // loop_pre_header
    _
  $region3: #{msst_forward.1} parent=0 // loop_header
    %s10 = sphi 0, %s14
    %p11 = scmp.ge.s32.totalorder %s10, 4
    %s20 = sphi 0, %s22
    %s23 = sphi 0, %s20
    %s24 = sphi 0, %s23
    %s40 = sphi 0, %s24
    %s44 = sphi 0, %s44
    %s46 = sphi 0, %s44
    %s47 = sphi 0, %s46
    %s61 = sphi 0, %s47
    %s65 = sphi 0, %s65
    %s67 = sphi 0, %s65
    %s68 = sphi 0, %s67
    %s82 = sphi 0, %s68
    %s86 = sphi 0, %s86
    %s88 = sphi 0, %s86
    %s89 = sphi 0, %s88
    %s103 = sphi 0, %s89
    %s109 = sphi 0, %s111
    %s112 = sphi 0, %s109
    %s113 = sphi 0, %s112
    %s129 = sphi 0, %s113
  $region4: #{msst_forward.1} parent=0 // loop_header_branch
    %13 = sbr.rel (%p11) target = $region8
  $region5: #{msst_forward.1} parent=0 // loop_body
    %s15 = ssub.s32 %s10, 1
    %s16 = ssub.s32 %s10, 2
    %s17 = sadd.s32 %s10, 1
    %s18 = ssub.s32 %s10, %s17
    %p19 = scmp.eq.s32.totalorder %s18, 0
    %s21 = sadd.s32 %s20, 1
    %s22 = scalar_select %p19, %s20, %s21
    %p25 = pneg %p19
    %p26 = scmp.eq.s32.totalorder %s10, 1
    %p27 = por %p25, %p26
    %p28 = scmp.ne.s32.totalorder %s20, %s23
    %p29 = scmp.eq.s32.totalorder %s10, 0
    %p30 = por %p28, %p29
    %p31 = scmp.ne.s32.totalorder %s20, %s23
    %p32 = scmp.eq.s32.totalorder %s15, 1
    %p33 = por %p31, %p32
    %p34 = scmp.ne.s32.totalorder %s23, %s24
    %p35 = scmp.eq.s32.totalorder %s15, 0
    %p36 = por %p34, %p35
    %p37 = scmp.ne.s32.totalorder %s23, %s24
    %p38 = scmp.eq.s32.totalorder %s16, 1
    %p39 = por %p37, %p38
    %p41 = scmp.ne.s32.totalorder %s24, %s40
    %p42 = scmp.eq.s32.totalorder %s16, 0
    %p43 = por %p41, %p42
    %s45 = sadd.s32 %s44, 1
    %p48 = scmp.eq.s32.totalorder %s10, 1
    %p49 = scmp.ne.s32.totalorder %s44, %s46
    %p50 = scmp.eq.s32.totalorder %s10, 0
    %p51 = por %p49, %p50
    %p52 = scmp.ne.s32.totalorder %s44, %s46
    %p53 = scmp.eq.s32.totalorder %s15, 1
    %p54 = por %p52, %p53
    %p55 = scmp.ne.s32.totalorder %s46, %s47
    %p56 = scmp.eq.s32.totalorder %s15, 0
    %p57 = por %p55, %p56
    %p58 = scmp.ne.s32.totalorder %s46, %s47
    %p59 = scmp.eq.s32.totalorder %s16, 1
    %p60 = por %p58, %p59
    %p62 = scmp.ne.s32.totalorder %s47, %s61
    %p63 = scmp.eq.s32.totalorder %s16, 0
    %p64 = por %p62, %p63
    %s66 = sadd.s32 %s65, 1
    %p69 = scmp.eq.s32.totalorder %s10, 1
    %p70 = scmp.ne.s32.totalorder %s65, %s67
    %p71 = scmp.eq.s32.totalorder %s10, 0
    %p72 = por %p70, %p71
    %p73 = scmp.ne.s32.totalorder %s65, %s67
    %p74 = scmp.eq.s32.totalorder %s15, 1
    %p75 = por %p73, %p74
    %p76 = scmp.ne.s32.totalorder %s67, %s68
    %p77 = scmp.eq.s32.totalorder %s15, 0
    %p78 = por %p76, %p77
    %p79 = scmp.ne.s32.totalorder %s67, %s68
    %p80 = scmp.eq.s32.totalorder %s16, 1
    %p81 = por %p79, %p80
    %p83 = scmp.ne.s32.totalorder %s68, %s82
    %p84 = scmp.eq.s32.totalorder %s16, 0
    %p85 = por %p83, %p84
    %s87 = sadd.s32 %s86, 1
    %p90 = scmp.eq.s32.totalorder %s10, 1
    %p91 = scmp.ne.s32.totalorder %s86, %s88
    %p92 = scmp.eq.s32.totalorder %s10, 0
    %p93 = por %p91, %p92
    %p94 = scmp.ne.s32.totalorder %s86, %s88
    %p95 = scmp.eq.s32.totalorder %s15, 1
    %p96 = por %p94, %p95
    %p97 = scmp.ne.s32.totalorder %s88, %s89
    %p98 = scmp.eq.s32.totalorder %s15, 0
    %p99 = por %p97, %p98
    %p100 = scmp.ne.s32.totalorder %s88, %s89
    %p101 = scmp.eq.s32.totalorder %s16, 1
    %p102 = por %p100, %p101
    %p104 = scmp.ne.s32.totalorder %s89, %s103
    %p105 = scmp.eq.s32.totalorder %s16, 0
    %p106 = por %p104, %p105
    %s107 = ssub.s32 %s10, %s17
    %p108 = scmp.eq.s32.totalorder %s107, 0
    %s110 = sadd.s32 %s109, 1
    %s111 = scalar_select %p108, %s109, %s110
    %p114 = pneg %p108
    %p115 = scmp.eq.s32.totalorder %s10, 1
    %p116 = por %p114, %p115
    %p117 = scmp.ne.s32.totalorder %s109, %s112
    %p118 = scmp.eq.s32.totalorder %s10, 0
    %p119 = por %p117, %p118
    %p120 = scmp.ne.s32.totalorder %s109, %s112
    %p121 = scmp.eq.s32.totalorder %s15, 1
    %p122 = por %p120, %p121
    %p123 = scmp.ne.s32.totalorder %s112, %s113
    %p124 = scmp.eq.s32.totalorder %s15, 0
    %p125 = por %p123, %p124
    %p126 = scmp.ne.s32.totalorder %s112, %s113
    %p127 = scmp.eq.s32.totalorder %s16, 1
    %p128 = por %p126, %p127
    %p130 = scmp.ne.s32.totalorder %s113, %s129
    %p131 = scmp.eq.s32.totalorder %s16, 0
    %p132 = por %p130, %p131
    %p133 = scmp.le.s32.totalorder 1, %s10
    %p134 = scmp.lt.s32.totalorder %s10, 3
    %p135 = pnand %p133, %p134
    %p136 = pneg %p135
    // Predicated region
    $region9: #{msst_forward.1} parent=5 // pred_check
      _
    $region10: #{msst_forward.1} parent=5 // pred_check_branch
      %138 = sbr.rel (%p135) target = $region12
    $region11: #{msst_forward.1} parent=5 // pred_region
      %s139 = ssub.s32 %s10, 1
      // Predicated region
      $region13: #{msst_forward.1} parent=11 // pred_check
        %p140 = pneg %p57
      $region14: #{msst_forward.1} parent=11 // pred_check_branch
        %142 = sbr.rel (%p140) target = $region16
      $region15: #{msst_forward.1} parent=11 // pred_region
        _
      $region16: #{msst_forward.1} parent=11 // pred_fallthru
        _
      // Predicated region
      $region17: #{msst_forward.1} parent=11 // pred_check
        %p143 = pneg %p78
      $region18: #{msst_forward.1} parent=11 // pred_check_branch
        %145 = sbr.rel (%p143) target = $region20
      $region19: #{msst_forward.1} parent=11 // pred_region
        _
      $region20: #{msst_forward.1} parent=11 // pred_fallthru
        _
      // Predicated region
      $region21: #{msst_forward.1} parent=11 // pred_check
        %p146 = pneg %p99
      $region22: #{msst_forward.1} parent=11 // pred_check_branch
        %148 = sbr.rel (%p146) target = $region24
      $region23: #{msst_forward.1} parent=11 // pred_region
        _
      $region24: #{msst_forward.1} parent=11 // pred_fallthru
        _
    $region12: #{msst_forward.1} parent=5 // pred_fallthru
      _
    %p149 = scmp.lt.s32.totalorder %s10, 2
    // Predicated region
    $region25: #{msst_forward.1} parent=5 // pred_check
      %p150 = pneg %p149
    $region26: #{msst_forward.1} parent=5 // pred_check_branch
      %152 = sbr.rel (%p150) target = $region28
    $region27: #{msst_forward.1} parent=5 // pred_region
      // Predicated region
      $region29: #{msst_forward.1} parent=27 // pred_check
        %p153 = pneg %p30
      $region30: #{msst_forward.1} parent=27 // pred_check_branch
        %155 = sbr.rel (%p153) target = $region32
      $region31: #{msst_forward.1} parent=27 // pred_region
        %p156 = scmp.lt.s32.totalorder %s10, 1
        %s157 = scalar_select %p156, %s10, 1
        %s158 = smul.addr %s157, 2
        %s159 = smul.addr %s158, 4
        %s160 = scalar_lea.vmem %s0, %s159
      $region32: #{msst_forward.1} parent=27 // pred_fallthru
        _
    $region28: #{msst_forward.1} parent=5 // pred_fallthru
      _
    %p161 = scmp.le.s32.totalorder 1, %s10
    %p162 = scmp.lt.s32.totalorder %s10, 3
    %p163 = pnand %p161, %p162
    %p164 = pneg %p163
    // Predicated region
    $region33: #{msst_forward.1} parent=5 // pred_check
      _
    $region34: #{msst_forward.1} parent=5 // pred_check_branch
      %166 = sbr.rel (%p163) target = $region36
    $region35: #{msst_forward.1} parent=5 // pred_region
      %s167 = ssub.s32 %s10, 1
      %p168 = scmp.lt.s32.totalorder %s15, 1
      %s169 = scalar_select %p168, %s15, 1
      %s170 = smul.addr %s169, 2
      %s171 = smul.addr %s170, 4
      %s172 = scalar_lea.vmem %s0, %s171
      %p173 = pneg %p36
      %p174 = pneg %p33
      %p175 = pneg %p57
      %p176 = pneg %p54
      %p177 = pneg %p78
      %p178 = pneg %p75
      %p179 = pneg %p99
      %p180 = pneg %p96
      %p181 = pneg %p125
      %p182 = pneg %p122
      %p183 = scmp.lt.s32.totalorder %s15, 1
      %s184 = scalar_select %p183, %s15, 1
      %s185 = smul.addr %s184, 6
      %s186 = smul.addr %s185, 8
      %s187 = scalar_lea.vmem %s4, %s186
      %p188 = scmp.lt.s32.totalorder %s15, 1
      %s189 = scalar_select %p188, %s15, 1
      %s190 = smul.addr %s189, 2
      %s191 = smul.addr %s190, 4
      %s192 = scalar_lea.vmem %s0, %s191
      %p193 = scmp.lt.s32.totalorder %s15, 1
      %s194 = scalar_select %p193, %s15, 1
      %s195 = smul.addr %s194, 6
      %s196 = smul.addr %s195, 8
      %s197 = scalar_lea.vmem %s4, %s196
      %v199 = vld [vmem:[%s192] sm:$0xff]
      %201 = vst [vmem:[#allocation1] ss:$2 sm:$0xff] %v199
      %v202 = vld.sshfl [vmem:[#allocation1] sm:$0xff pattern:$0x75316420]
      %v203 = vld.sshfl [vmem:[#allocation1 + $0x8] sm:$0xff pattern:$0x75316420]
      %v206 = vpack.c.bf16 %v202, %v202
      %v207 = vpack.c.bf16 %v203, %v203
      %v208 = vld [vmem:[%s1] sm:$0xf]
      %v209 = vld [vmem:[%s1 + $0x4] sm:$0xf]
      %v210 = vld [vmem:[%s1 + $0x8] sm:$0x3]
      %v211 = vld [vmem:[%s2] sm:$0xff]
      %v212 = vld [vmem:[%s2 + $0x8] sm:$0xff]
      %v213 = vld [vmem:[%s2 + $0x10] sm:$0xf]
      %215 = vset.pattern.permute.xlu0 0
      %216 = vperm.xlu0 %215, %v211
      %v217 = vpop.permute.xlu0 %216
      %220 = vset.pattern.permute.xlu0 0
      %221 = vperm.xlu0 %220, %v212
      %v222 = vpop.permute.xlu0 %221
      %225 = vset.pattern.permute.xlu0 0
      %226 = vperm.xlu0 %225, %v213
      %v227 = vpop.permute.xlu0 %226
      %v232 = vunpack.c.l.b16 %v208
      %v233 = vunpack.c.l.b16 %v209
      %v234 = vunpack.c.l.b16 %v210
      %v235 = vpack.c.b16 %v233, %v232
      %v236 = vpack.c.b16 %v234, %v234
      %vm237 = vcmask 31744
      %v239 = vsel %vm237, %v235, 0
      %v242 = vsel %vm237, %v236, 0
      %vm244 = vcmask 1041408
      %v246 = vsel %vm244, %v206, 0
      %v249 = vsel %vm244, %v207, 0
      %251 = vmatpush.bf16.msra.mxu0 0
      %252 = vmatpush.bf16.msra.mxu0 0
      %253 = vmatpush.bf16.msra.mxu0 0
      %254 = vmatpush.bf16.msra.mxu0 0
      %255 = vmatpush.bf16.msra.mxu0 0
      %256 = vmatpush.bf16.msra.mxu0 0
      %257 = vmatpush.bf16.msra.mxu0 0
      %258 = vmatpush.bf16.msra.mxu0 %v246
      %259 = vmatmul.bf16.gmra.mxu0 %v239
      %v260 = vpop.f32.mrf.mxu0
      %v261 = vadd.f32 %v217, %v260
      %v262 = vpop.f32.mrf.mxu0
      %v263 = vadd.f32 %v222, %v262
      %264 = vmatmul.bf16.gmra.mxu0 %v242
      %v265 = vpop.f32.mrf.mxu0
      %v266 = vadd.f32 %v227, %v265
      %v267 = vpop.f32.mrf.mxu0
      %268 = vdwg.mxu0
      %269 = vmatpush.bf16.msra.mxu0 0
      %270 = vmatpush.bf16.msra.mxu0 0
      %271 = vmatpush.bf16.msra.mxu0 0
      %272 = vmatpush.bf16.msra.mxu0 0
      %273 = vmatpush.bf16.msra.mxu0 0
      %274 = vmatpush.bf16.msra.mxu0 0
      %275 = vmatpush.bf16.msra.mxu0 0
      %276 = vmatpush.bf16.msra.mxu0 %v249
      %277 = vmatmul.bf16.gmra.mxu0 %v239
      %v278 = vpop.f32.mrf.mxu0
      %v279 = vadd.f32 %v217, %v278
      %v280 = vpop.f32.mrf.mxu0
      %v281 = vadd.f32 %v222, %v280
      %282 = vmatmul.bf16.gmra.mxu0 %v242
      %v283 = vpop.f32.mrf.mxu0
      %v284 = vadd.f32 %v227, %v283
      %v285 = vpop.f32.mrf.mxu0
      %286 = vdwg.mxu0
      %v287 = vmax.f32 %v261, 0.0
      %v288 = vmax.f32 %v279, 0.0
      %v289 = vmax.f32 %v263, 0.0
      %v290 = vmax.f32 %v281, 0.0
      %v291 = vmax.f32 %v266, 0.0
      %v292 = vmax.f32 %v284, 0.0
      %293 = vst [vmem:[%s197] sm:$0xf] %v287
      %294 = vst [vmem:[%s197 + $0x8] sm:$0xf] %v288
      %v297 = vrot.slane %v287, 4
      %v298 = vrot.slane %v288, 4
      %301 = vrot.lane.b32.xlu0 %v297, 17
      %v302 = vpop.permute.xlu0 %301
      %303 = vrot.lane.b32.xlu0 %v298, 17
      %v304 = vpop.permute.xlu0 %303
      %v305 = vlaneseq
      %v306 = vand.u32 %v305, 127
      %vm307 = vcmp.lt.s32.totalorder %v306, 17
      %v308 = vsel %vm307, %v302, %v304
      %v309 = vsel %vm307, %v304, %v302
      %s310 = scalar_lea.vmem %s3, 4
      %v311 = vld [vmem:[%s310] ss:$8 sm:$0x3]
      %v313 = vperm.slane %v311, 0
      %v314 = vperm.slane %v311, 1
      %v317 = vmul.f32 %v309, %v313
      %v318 = vmul.f32 %v308, %v314
      %319 = vst [vmem:[#allocation2] sm:$0xf] %v317
      %320 = vst [vmem:[#allocation2 + $0x8] sm:$0xf] %v318
      %321 = vrot.lane.b32.xlu0 %v297, 16
      %v322 = vpop.permute.xlu0 %321
      %323 = vrot.lane.b32.xlu0 %v298, 16
      %v324 = vpop.permute.xlu0 %323
      %vm325 = vcmp.lt.s32.totalorder %v306, 16
      %v326 = vsel %vm325, %v322, %v324
      %v327 = vsel %vm325, %v324, %v322
      %s328 = scalar_lea.vmem %s3, 5
      %v329 = vld [vmem:[%s328] ss:$8 sm:$0x3]
      %v331 = vperm.slane %v329, 0
      %v332 = vperm.slane %v329, 1
      %v335 = vmul.f32 %v327, %v331
      %v336 = vmul.f32 %v326, %v332
      %v339 = vrot.slane %v335, 4
      %v340 = vrot.slane %v336, 4
      %343 = vst [vmem:[#allocation2] sm:$0xf0] %v339
      %344 = vst [vmem:[#allocation2 + $0x8] sm:$0xf0] %v340
      %345 = vrot.lane.b32.xlu0 %v297, 15
      %v346 = vpop.permute.xlu0 %345
      %347 = vrot.lane.b32.xlu0 %v298, 15
      %v348 = vpop.permute.xlu0 %347
      %vm349 = vcmp.lt.s32.totalorder %v306, 15
      %v350 = vsel %vm349, %v346, %v348
      %v351 = vsel %vm349, %v348, %v346
      %s352 = scalar_lea.vmem %s3, 6
      %v353 = vld [vmem:[%s352] ss:$8 sm:$0x3]
      %v355 = vperm.slane %v353, 0
      %v356 = vperm.slane %v353, 1
      %v359 = vmul.f32 %v351, %v355
      %v360 = vmul.f32 %v350, %v356
      %361 = vst [vmem:[#allocation2 + $0x10] sm:$0xf] %v359
      %362 = vst [vmem:[#allocation2 + $0x18] sm:$0xf] %v360
      %363 = vrot.lane.b32.xlu0 %v297, 1
      %v364 = vpop.permute.xlu0 %363
      %365 = vrot.lane.b32.xlu0 %v298, 1
      %v366 = vpop.permute.xlu0 %365
      %vm367 = vcmp.lt.s32.totalorder %v306, 1
      %v368 = vsel %vm367, %v364, %v366
      %v369 = vsel %vm367, %v366, %v364
      %s370 = scalar_lea.vmem %s3, 17
      %v371 = vld [vmem:[%s370] ss:$8 sm:$0x3]
      %v373 = vperm.slane %v371, 0
      %v374 = vperm.slane %v371, 1
      %v377 = vmul.f32 %v369, %v373
      %v378 = vmul.f32 %v368, %v374
      %v381 = vrot.slane %v377, 4
      %v382 = vrot.slane %v378, 4
      %385 = vst [vmem:[#allocation2 + $0x10] sm:$0xf0] %v381
      %386 = vst [vmem:[#allocation2 + $0x18] sm:$0xf0] %v382
      %387 = vst [vmem:[#allocation2 + $0x20] sm:$0xf] %v297
      %388 = vst [vmem:[#allocation2 + $0x28] sm:$0xf] %v298
      %389 = vrot.lane.b32.xlu0 %v297, 127
      %v390 = vpop.permute.xlu0 %389
      %391 = vrot.lane.b32.xlu0 %v298, 127
      %v392 = vpop.permute.xlu0 %391
      %vm393 = vcmp.lt.s32.totalorder %v306, 127
      %v394 = vsel %vm393, %v390, %v392
      %v395 = vsel %vm393, %v392, %v390
      %s396 = scalar_lea.vmem %s3, 18
      %v397 = vld [vmem:[%s396] ss:$8 sm:$0x3]
      %v399 = vperm.slane %v397, 0
      %v400 = vperm.slane %v397, 1
      %v403 = vmul.f32 %v394, %v399
      %v404 = vmul.f32 %v395, %v400
      %v407 = vrot.slane %v403, 4
      %v408 = vrot.slane %v404, 4
      %411 = vst [vmem:[#allocation2 + $0x20] sm:$0xf0] %v407
      %412 = vst [vmem:[#allocation2 + $0x28] sm:$0xf0] %v408
      %413 = vrot.lane.b32.xlu0 %v297, 113
      %v414 = vpop.permute.xlu0 %413
      %415 = vrot.lane.b32.xlu0 %v298, 113
      %v416 = vpop.permute.xlu0 %415
      %vm417 = vcmp.lt.s32.totalorder %v306, 113
      %v418 = vsel %vm417, %v414, %v416
      %v419 = vsel %vm417, %v416, %v414
      %s420 = scalar_lea.vmem %s3, 21
      %v421 = vld [vmem:[%s420] ss:$8 sm:$0x3]
      %v423 = vperm.slane %v421, 0
      %v424 = vperm.slane %v421, 1
      %v427 = vmul.f32 %v418, %v423
      %v428 = vmul.f32 %v419, %v424
      %429 = vst [vmem:[#allocation2 + $0x30] sm:$0xf] %v427
      %430 = vst [vmem:[#allocation2 + $0x38] sm:$0xf] %v428
      %431 = vrot.lane.b32.xlu0 %v297, 112
      %v432 = vpop.permute.xlu0 %431
      %433 = vrot.lane.b32.xlu0 %v298, 112
      %v434 = vpop.permute.xlu0 %433
      %vm435 = vcmp.lt.s32.totalorder %v306, 112
      %v436 = vsel %vm435, %v432, %v434
      %v437 = vsel %vm435, %v434, %v432
      %s438 = scalar_lea.vmem %s3, 22
      %v439 = vld [vmem:[%s438] ss:$8 sm:$0x3]
      %v441 = vperm.slane %v439, 0
      %v442 = vperm.slane %v439, 1
      %v445 = vmul.f32 %v436, %v441
      %v446 = vmul.f32 %v437, %v442
      %v449 = vrot.slane %v445, 4
      %v450 = vrot.slane %v446, 4
      %453 = vst [vmem:[#allocation2 + $0x30] sm:$0xf0] %v449
      %454 = vst [vmem:[#allocation2 + $0x38] sm:$0xf0] %v450
      %455 = vrot.lane.b32.xlu0 %v297, 111
      %v456 = vpop.permute.xlu0 %455
      %457 = vrot.lane.b32.xlu0 %v298, 111
      %v458 = vpop.permute.xlu0 %457
      %vm459 = vcmp.lt.s32.totalorder %v306, 111
      %v460 = vsel %vm459, %v456, %v458
      %v461 = vsel %vm459, %v458, %v456
      %s462 = scalar_lea.vmem %s3, 23
      %v463 = vld [vmem:[%s462] ss:$8 sm:$0x3]
      %v465 = vperm.slane %v463, 0
      %v466 = vperm.slane %v463, 1
      %v469 = vmul.f32 %v460, %v465
      %v470 = vmul.f32 %v461, %v466
      %471 = vst [vmem:[#allocation2 + $0x40] sm:$0xf] %v469
      %472 = vst [vmem:[#allocation2 + $0x48] sm:$0xf] %v470
      %v473 = vld [vmem:[%s1 + $0x8] sm:$0xc]
      %v474 = vld [vmem:[#allocation2] sm:$0xff]
      %v475 = vld [vmem:[#allocation2 + $0x8] sm:$0xff]
      %v476 = vld [vmem:[#allocation2 + $0x10] sm:$0xff]
      %v477 = vld [vmem:[#allocation2 + $0x18] sm:$0xff]
      %v478 = vld [vmem:[#allocation2 + $0x20] sm:$0xff]
      %v479 = vld [vmem:[#allocation2 + $0x28] sm:$0xff]
      %v480 = vld [vmem:[#allocation2 + $0x30] sm:$0xff]
      %v481 = vld [vmem:[#allocation2 + $0x38] sm:$0xff]
      %v482 = vld [vmem:[#allocation2 + $0x40] sm:$0xf]
      %v483 = vld [vmem:[#allocation2 + $0x48] sm:$0xf]
      %v484 = vpack.c.bf16 %v476, %v474
      %v485 = vpack.c.bf16 %v477, %v475
      %v486 = vpack.c.bf16 %v480, %v478
      %v487 = vpack.c.bf16 %v481, %v479
      %v488 = vpack.c.bf16 %v482, %v482
      %v489 = vpack.c.bf16 %v483, %v483
      %v490 = vld [vmem:[%s2 + $0x14] sm:$0xf]
      %492 = vset.pattern.permute.xlu0 0
      %493 = vperm.xlu0 %492, %v490
      %v494 = vpop.permute.xlu0 %493
      %v497 = vunpack.c.l.b16 %v473
      %v498 = vpack.c.b16 %v497, %v497
      %v499 = vrot.slane %v498, 2
      %vm500 = vcmask 293888
      %v502 = vsel %vm500, %v499, 0
      %v505 = vsel %vm244, %v488, 0
      %v508 = vsel %vm244, %v489, 0
      %510 = vmatpush.bf16.msra.mxu0 0
      %511 = vmatpush.bf16.msra.mxu0 0
      %512 = vmatpush.bf16.msra.mxu0 0
      %513 = vmatpush.bf16.msra.mxu0 0
      %514 = vmatpush.bf16.msra.mxu0 0
      %515 = vmatpush.bf16.msra.mxu0 %v505
      %516 = vmatpush.bf16.msra.mxu0 %v486
      %517 = vmatpush.bf16.msra.mxu0 %v484
      %518 = vmatmul.bf16.gmra.mxu0 %v502
      %v519 = vpop.f32.mrf.mxu0
      %v520 = vadd.f32 %v494, %v519
      %v521 = vpop.f32.mrf.mxu0
      %522 = vdwg.mxu0
      %523 = vmatpush.bf16.msra.mxu0 0
      %524 = vmatpush.bf16.msra.mxu0 0
      %525 = vmatpush.bf16.msra.mxu0 0
      %526 = vmatpush.bf16.msra.mxu0 0
      %527 = vmatpush.bf16.msra.mxu0 0
      %528 = vmatpush.bf16.msra.mxu0 %v508
      %529 = vmatpush.bf16.msra.mxu0 %v487
      %530 = vmatpush.bf16.msra.mxu0 %v485
      %531 = vmatmul.bf16.gmra.mxu0 %v502
      %v532 = vpop.f32.mrf.mxu0
      %v533 = vadd.f32 %v494, %v532
      %v534 = vpop.f32.mrf.mxu0
      %535 = vdwg.mxu0
      %v536 = vmax.f32 %v520, 0.0
      %v537 = vmax.f32 %v533, 0.0
      %v540 = vrot.slane %v536, 4
      %v541 = vrot.slane %v537, 4
      %544 = vst [vmem:[%s197] sm:$0xf0] %v540
      %545 = vst [vmem:[%s197 + $0x8] sm:$0xf0] %v541
      %546 = vrot.lane.b32.xlu0 %v289, 32
      %v547 = vpop.permute.xlu0 %546
      %548 = vrot.lane.b32.xlu0 %v290, 32
      %v549 = vpop.permute.xlu0 %548
      %vm550 = vcmp.lt.s32.totalorder %v306, 32
      %v551 = vsel %vm550, %v547, %v549
      %v552 = vsel %vm550, %v549, %v547
      %s553 = scalar_lea.vmem %s3, 3
      %v554 = vld [vmem:[%s553] ss:$8 sm:$0x3]
      %v556 = vperm.slane %v554, 0
      %v557 = vperm.slane %v554, 1
      %v560 = vmul.f32 %v552, %v556
      %v561 = vmul.f32 %v551, %v557
      %562 = vst [vmem:[#allocation2] sm:$0xf] %v560
      %563 = vst [vmem:[#allocation2 + $0x8] sm:$0xf] %v561
      %564 = vrot.lane.b32.xlu0 %v289, 16
      %v565 = vpop.permute.xlu0 %564
      %566 = vrot.lane.b32.xlu0 %v290, 16
      %v567 = vpop.permute.xlu0 %566
      %v568 = vsel %vm325, %v565, %v567
      %v569 = vsel %vm325, %v567, %v565
      %v570 = vld [vmem:[%s328] ss:$8 sm:$0x3]
      %v572 = vperm.slane %v570, 0
      %v573 = vperm.slane %v570, 1
      %v576 = vmul.f32 %v569, %v572
      %v577 = vmul.f32 %v568, %v573
      %v580 = vrot.slane %v576, 4
      %v581 = vrot.slane %v577, 4
      %584 = vst [vmem:[#allocation2] sm:$0xf0] %v580
      %585 = vst [vmem:[#allocation2 + $0x8] sm:$0xf0] %v581
      %586 = vst [vmem:[#allocation2 + $0x10] sm:$0xf] %v289
      %587 = vst [vmem:[#allocation2 + $0x18] sm:$0xf] %v290
      %588 = vrot.lane.b32.xlu0 %v289, 112
      %v589 = vpop.permute.xlu0 %588
      %590 = vrot.lane.b32.xlu0 %v290, 112
      %v591 = vpop.permute.xlu0 %590
      %v592 = vsel %vm435, %v589, %v591
      %v593 = vsel %vm435, %v591, %v589
      %v594 = vld [vmem:[%s438] ss:$8 sm:$0x3]
      %v596 = vperm.slane %v594, 0
      %v597 = vperm.slane %v594, 1
      %v600 = vmul.f32 %v592, %v596
      %v601 = vmul.f32 %v593, %v597
      %v604 = vrot.slane %v600, 4
      %v605 = vrot.slane %v601, 4
      %608 = vst [vmem:[#allocation2 + $0x10] sm:$0xf0] %v604
      %609 = vst [vmem:[#allocation2 + $0x18] sm:$0xf0] %v605
      %610 = vrot.lane.b32.xlu0 %v289, 96
      %v611 = vpop.permute.xlu0 %610
      %612 = vrot.lane.b32.xlu0 %v290, 96
      %v613 = vpop.permute.xlu0 %612
      %vm614 = vcmp.lt.s32.totalorder %v306, 96
      %v615 = vsel %vm614, %v611, %v613
      %v616 = vsel %vm614, %v613, %v611
      %s617 = scalar_lea.vmem %s3, 32
      %v618 = vld [vmem:[%s617] ss:$8 sm:$0x3]
      %v620 = vperm.slane %v618, 0
      %v621 = vperm.slane %v618, 1
      %v624 = vmul.f32 %v615, %v620
      %v625 = vmul.f32 %v616, %v621
      %626 = vst [vmem:[#allocation2 + $0x20] sm:$0xf] %v624
      %627 = vst [vmem:[#allocation2 + $0x28] sm:$0xf] %v625
      %v628 = vld [vmem:[%s1 + $0xc] sm:$0x3]
      %v629 = vld [vmem:[#allocation2] sm:$0xff]
      %v630 = vld [vmem:[#allocation2 + $0x8] sm:$0xff]
      %v631 = vld [vmem:[#allocation2 + $0x10] sm:$0xff]
      %v632 = vld [vmem:[#allocation2 + $0x18] sm:$0xff]
      %v633 = vld [vmem:[#allocation2 + $0x20] sm:$0xf]
      %v634 = vld [vmem:[#allocation2 + $0x28] sm:$0xf]
      %v635 = vpack.c.bf16 %v631, %v629
      %v636 = vpack.c.bf16 %v632, %v630
      %v637 = vpack.c.bf16 %v633, %v633
      %v638 = vpack.c.bf16 %v634, %v634
      %v639 = vld [vmem:[%s2 + $0x18] sm:$0xf]
      %641 = vset.pattern.permute.xlu0 0
      %642 = vperm.xlu0 %641, %v639
      %v643 = vpop.permute.xlu0 %642
      %vm645 = vcmask 162816
      %v647 = vsel %vm645, %v628, 0
      %v650 = vsel %vm244, %v637, 0
      %v653 = vsel %vm244, %v638, 0
      %655 = vmatpush.bf16.msra.mxu0 0
      %656 = vmatpush.bf16.msra.mxu0 0
      %657 = vmatpush.bf16.msra.mxu0 0
      %658 = vmatpush.bf16.msra.mxu0 0
      %659 = vmatpush.bf16.msra.mxu0 0
      %660 = vmatpush.bf16.msra.mxu0 0
      %661 = vmatpush.bf16.msra.mxu0 %v650
      %662 = vmatpush.bf16.msra.mxu0 %v635
      %663 = vmatmul.bf16.gmra.mxu0 %v647
      %v664 = vpop.f32.mrf.mxu0
      %v665 = vadd.f32 %v643, %v664
      %v666 = vpop.f32.mrf.mxu0
      %667 = vdwg.mxu0
      %668 = vmatpush.bf16.msra.mxu0 0
      %669 = vmatpush.bf16.msra.mxu0 0
      %670 = vmatpush.bf16.msra.mxu0 0
      %671 = vmatpush.bf16.msra.mxu0 0
      %672 = vmatpush.bf16.msra.mxu0 0
      %673 = vmatpush.bf16.msra.mxu0 0
      %674 = vmatpush.bf16.msra.mxu0 %v653
      %675 = vmatpush.bf16.msra.mxu0 %v636
      %676 = vmatmul.bf16.gmra.mxu0 %v647
      %v677 = vpop.f32.mrf.mxu0
      %v678 = vadd.f32 %v643, %v677
      %v679 = vpop.f32.mrf.mxu0
      %680 = vdwg.mxu0
      %v681 = vmax.f32 %v665, 0.0
      %v682 = vmax.f32 %v678, 0.0
      %683 = vrot.lane.b32.xlu0 %v681, 2
      %v684 = vpop.permute.xlu0 %683
      %685 = vrot.lane.b32.xlu0 %v682, 2
      %v686 = vpop.permute.xlu0 %685
      %vm687 = vcmp.lt.s32.totalorder %v306, 2
      %v688 = vsel %vm687, %v684, %v686
      %v689 = vsel %vm687, %v686, %v684
      %s690 = scalar_lea.vmem %s3, 16
      %v691 = vld [vmem:[%s690] ss:$8 sm:$0x3]
      %v693 = vperm.slane %v691, 0
      %v694 = vperm.slane %v691, 1
      %v697 = vmul.f32 %v689, %v693
      %v698 = vmul.f32 %v688, %v694
      %699 = vst [vmem:[#allocation2] sm:$0xf] %v697
      %700 = vst [vmem:[#allocation2 + $0x8] sm:$0xf] %v698
      %701 = vrot.lane.b32.xlu0 %v681, 1
      %v702 = vpop.permute.xlu0 %701
      %703 = vrot.lane.b32.xlu0 %v682, 1
      %v704 = vpop.permute.xlu0 %703
      %v705 = vsel %vm367, %v702, %v704
      %v706 = vsel %vm367, %v704, %v702
      %v707 = vld [vmem:[%s370] ss:$8 sm:$0x3]
      %v709 = vperm.slane %v707, 0
      %v710 = vperm.slane %v707, 1
      %v713 = vmul.f32 %v706, %v709
      %v714 = vmul.f32 %v705, %v710
      %v717 = vrot.slane %v713, 4
      %v718 = vrot.slane %v714, 4
      %721 = vst [vmem:[#allocation2] sm:$0xf0] %v717
      %722 = vst [vmem:[#allocation2 + $0x8] sm:$0xf0] %v718
      %723 = vst [vmem:[#allocation2 + $0x10] sm:$0xf] %v681
      %724 = vst [vmem:[#allocation2 + $0x18] sm:$0xf] %v682
      %725 = vrot.lane.b32.xlu0 %v681, 127
      %v726 = vpop.permute.xlu0 %725
      %727 = vrot.lane.b32.xlu0 %v682, 127
      %v728 = vpop.permute.xlu0 %727
      %v729 = vsel %vm393, %v726, %v728
      %v730 = vsel %vm393, %v728, %v726
      %v731 = vld [vmem:[%s396] ss:$8 sm:$0x3]
      %v733 = vperm.slane %v731, 0
      %v734 = vperm.slane %v731, 1
      %v737 = vmul.f32 %v729, %v733
      %v738 = vmul.f32 %v730, %v734
      %v741 = vrot.slane %v737, 4
      %v742 = vrot.slane %v738, 4
      %745 = vst [vmem:[#allocation2 + $0x10] sm:$0xf0] %v741
      %746 = vst [vmem:[#allocation2 + $0x18] sm:$0xf0] %v742
      %747 = vrot.lane.b32.xlu0 %v681, 126
      %v748 = vpop.permute.xlu0 %747
      %749 = vrot.lane.b32.xlu0 %v682, 126
      %v750 = vpop.permute.xlu0 %749
      %vm751 = vcmp.lt.s32.totalorder %v306, 126
      %v752 = vsel %vm751, %v748, %v750
      %v753 = vsel %vm751, %v750, %v748
      %s754 = scalar_lea.vmem %s3, 19
      %v755 = vld [vmem:[%s754] ss:$8 sm:$0x3]
      %v757 = vperm.slane %v755, 0
      %v758 = vperm.slane %v755, 1
      %v761 = vmul.f32 %v752, %v757
      %v762 = vmul.f32 %v753, %v758
      %763 = vst [vmem:[#allocation2 + $0x20] sm:$0xf] %v761
      %764 = vst [vmem:[#allocation2 + $0x28] sm:$0xf] %v762
      %v765 = vld [vmem:[%s1 + $0xc] sm:$0xc]
      %v766 = vld [vmem:[#allocation2] sm:$0xff]
      %v767 = vld [vmem:[#allocation2 + $0x8] sm:$0xff]
      %v768 = vld [vmem:[#allocation2 + $0x10] sm:$0xff]
      %v769 = vld [vmem:[#allocation2 + $0x18] sm:$0xff]
      %v770 = vld [vmem:[#allocation2 + $0x20] sm:$0xf]
      %v771 = vld [vmem:[#allocation2 + $0x28] sm:$0xf]
      %v772 = vpack.c.bf16 %v768, %v766
      %v773 = vpack.c.bf16 %v769, %v767
      %v774 = vpack.c.bf16 %v770, %v770
      %v775 = vpack.c.bf16 %v771, %v771
      %v776 = vld [vmem:[%s2 + $0x1c] sm:$0xf]
      %778 = vset.pattern.permute.xlu0 0
      %779 = vperm.xlu0 %778, %v776
      %v780 = vpop.permute.xlu0 %779
      %v783 = vunpack.c.l.b16 %v765
      %v784 = vpack.c.b16 %v783, %v783
      %v785 = vrot.slane %v784, 2
      %v787 = vsel %vm645, %v785, 0
      %v790 = vsel %vm244, %v774, 0
      %v793 = vsel %vm244, %v775, 0
      %795 = vmatpush.bf16.msra.mxu0 0
      %796 = vmatpush.bf16.msra.mxu0 0
      %797 = vmatpush.bf16.msra.mxu0 0
      %798 = vmatpush.bf16.msra.mxu0 0
      %799 = vmatpush.bf16.msra.mxu0 0
      %800 = vmatpush.bf16.msra.mxu0 0
      %801 = vmatpush.bf16.msra.mxu0 %v790
      %802 = vmatpush.bf16.msra.mxu0 %v772
      %803 = vmatmul.bf16.gmra.mxu0 %v787
      %v804 = vpop.f32.mrf.mxu0
      %v805 = vadd.f32 %v780, %v804
      %v806 = vpop.f32.mrf.mxu0
      %807 = vdwg.mxu0
      %808 = vmatpush.bf16.msra.mxu0 0
      %809 = vmatpush.bf16.msra.mxu0 0
      %810 = vmatpush.bf16.msra.mxu0 0
      %811 = vmatpush.bf16.msra.mxu0 0
      %812 = vmatpush.bf16.msra.mxu0 0
      %813 = vmatpush.bf16.msra.mxu0 0
      %814 = vmatpush.bf16.msra.mxu0 %v793
      %815 = vmatpush.bf16.msra.mxu0 %v773
      %816 = vmatmul.bf16.gmra.mxu0 %v787
      %v817 = vpop.f32.mrf.mxu0
      %v818 = vadd.f32 %v780, %v817
      %v819 = vpop.f32.mrf.mxu0
      %820 = vdwg.mxu0
      %v821 = vmax.f32 %v805, 0.0
      %v822 = vmax.f32 %v818, 0.0
      %823 = vst [vmem:[%s197 + $0x10] sm:$0xf] %v821
      %824 = vst [vmem:[%s197 + $0x18] sm:$0xf] %v822
      %v827 = vrot.slane %v289, 4
      %v828 = vrot.slane %v290, 4
      %831 = vrot.lane.b32.xlu0 %v827, 48
      %v832 = vpop.permute.xlu0 %831
      %833 = vrot.lane.b32.xlu0 %v828, 48
      %v834 = vpop.permute.xlu0 %833
      %vm835 = vcmp.lt.s32.totalorder %v306, 48
      %v836 = vsel %vm835, %v832, %v834
      %v837 = vsel %vm835, %v834, %v832
      %s838 = scalar_lea.vmem %s3, 2
      %v839 = vld [vmem:[%s838] ss:$8 sm:$0x3]
      %v841 = vperm.slane %v839, 0
      %v842 = vperm.slane %v839, 1
      %v845 = vmul.f32 %v837, %v841
      %v846 = vmul.f32 %v836, %v842
      %847 = vst [vmem:[#allocation2] sm:$0xf] %v845
      %848 = vst [vmem:[#allocation2 + $0x8] sm:$0xf] %v846
      %849 = vrot.lane.b32.xlu0 %v827, 32
      %v850 = vpop.permute.xlu0 %849
      %851 = vrot.lane.b32.xlu0 %v828, 32
      %v852 = vpop.permute.xlu0 %851
      %v853 = vsel %vm550, %v850, %v852
      %v854 = vsel %vm550, %v852, %v850
      %v855 = vld [vmem:[%s553] ss:$8 sm:$0x3]
      %v857 = vperm.slane %v855, 0
      %v858 = vperm.slane %v855, 1
      %v861 = vmul.f32 %v854, %v857
      %v862 = vmul.f32 %v853, %v858
      %v865 = vrot.slane %v861, 4
      %v866 = vrot.slane %v862, 4
      %869 = vst [vmem:[#allocation2] sm:$0xf0] %v865
      %870 = vst [vmem:[#allocation2 + $0x8] sm:$0xf0] %v866
      %871 = vrot.lane.b32.xlu0 %v827, 16
      %v872 = vpop.permute.xlu0 %871
      %873 = vrot.lane.b32.xlu0 %v828, 16
      %v874 = vpop.permute.xlu0 %873
      %v875 = vsel %vm325, %v872, %v874
      %v876 = vsel %vm325, %v874, %v872
      %v877 = vld [vmem:[%s328] ss:$8 sm:$0x3]
      %v879 = vperm.slane %v877, 0
      %v880 = vperm.slane %v877, 1
      %v883 = vmul.f32 %v876, %v879
      %v884 = vmul.f32 %v875, %v880
      %885 = vst [vmem:[#allocation2 + $0x10] sm:$0xf] %v883
      %886 = vst [vmem:[#allocation2 + $0x18] sm:$0xf] %v884
      %887 = vst [vmem:[#allocation2 + $0x10] sm:$0xf0] %v289
      %888 = vst [vmem:[#allocation2 + $0x18] sm:$0xf0] %v290
      %889 = vrot.lane.b32.xlu0 %v827, 112
      %v890 = vpop.permute.xlu0 %889
      %891 = vrot.lane.b32.xlu0 %v828, 112
      %v892 = vpop.permute.xlu0 %891
      %v893 = vsel %vm435, %v890, %v892
      %v894 = vsel %vm435, %v892, %v890
      %v895 = vld [vmem:[%s438] ss:$8 sm:$0x3]
      %v897 = vperm.slane %v895, 0
      %v898 = vperm.slane %v895, 1
      %v901 = vmul.f32 %v893, %v897
      %v902 = vmul.f32 %v894, %v898
      %903 = vst [vmem:[#allocation2 + $0x20] sm:$0xf] %v901
      %904 = vst [vmem:[#allocation2 + $0x28] sm:$0xf] %v902
      %905 = vrot.lane.b32.xlu0 %v827, 96
      %v906 = vpop.permute.xlu0 %905
      %907 = vrot.lane.b32.xlu0 %v828, 96
      %v908 = vpop.permute.xlu0 %907
      %v909 = vsel %vm614, %v906, %v908
      %v910 = vsel %vm614, %v908, %v906
      %v911 = vld [vmem:[%s617] ss:$8 sm:$0x3]
      %v913 = vperm.slane %v911, 0
      %v914 = vperm.slane %v911, 1
      %v917 = vmul.f32 %v909, %v913
      %v918 = vmul.f32 %v910, %v914
      %v921 = vrot.slane %v917, 4
      %v922 = vrot.slane %v918, 4
      %925 = vst [vmem:[#allocation2 + $0x20] sm:$0xf0] %v921
      %926 = vst [vmem:[#allocation2 + $0x28] sm:$0xf0] %v922
      %927 = vrot.lane.b32.xlu0 %v827, 80
      %v928 = vpop.permute.xlu0 %927
      %929 = vrot.lane.b32.xlu0 %v828, 80
      %v930 = vpop.permute.xlu0 %929
      %vm931 = vcmp.lt.s32.totalorder %v306, 80
      %v932 = vsel %vm931, %v928, %v930
      %v933 = vsel %vm931, %v930, %v928
      %s934 = scalar_lea.vmem %s3, 33
      %v935 = vld [vmem:[%s934] ss:$8 sm:$0x3]
      %v937 = vperm.slane %v935, 0
      %v938 = vperm.slane %v935, 1
      %v941 = vmul.f32 %v932, %v937
      %v942 = vmul.f32 %v933, %v938
      %943 = vst [vmem:[#allocation2 + $0x30] sm:$0xf] %v941
      %944 = vst [vmem:[#allocation2 + $0x38] sm:$0xf] %v942
      %v945 = vld [vmem:[%s1 + $0x10] sm:$0x3]
      %v946 = vld [vmem:[#allocation2] sm:$0xff]
      %v947 = vld [vmem:[#allocation2 + $0x8] sm:$0xff]
      %v948 = vld [vmem:[#allocation2 + $0x10] sm:$0xff]
      %v949 = vld [vmem:[#allocation2 + $0x18] sm:$0xff]
      %v950 = vld [vmem:[#allocation2 + $0x20] sm:$0xff]
      %v951 = vld [vmem:[#allocation2 + $0x28] sm:$0xff]
      %v952 = vld [vmem:[#allocation2 + $0x30] sm:$0xf]
      %v953 = vld [vmem:[#allocation2 + $0x38] sm:$0xf]
      %v954 = vpack.c.bf16 %v948, %v946
      %v955 = vpack.c.bf16 %v949, %v947
      %v956 = vpack.c.bf16 %v952, %v950
      %v957 = vpack.c.bf16 %v953, %v951
      %v958 = vld [vmem:[%s2 + $0x20] sm:$0xf]
      %960 = vset.pattern.permute.xlu0 0
      %961 = vperm.xlu0 %960, %v958
      %v962 = vpop.permute.xlu0 %961
      %vm964 = vcmask 228352
      %v966 = vsel %vm964, %v945, 0
      %vm968 = vcmask 1045504
      %v970 = vsel %vm968, %v956, 0
      %v973 = vsel %vm968, %v957, 0
      %975 = vmatpush.bf16.msra.mxu0 0
      %976 = vmatpush.bf16.msra.mxu0 0
      %977 = vmatpush.bf16.msra.mxu0 0
      %978 = vmatpush.bf16.msra.mxu0 0
      %979 = vmatpush.bf16.msra.mxu0 0
      %980 = vmatpush.bf16.msra.mxu0 0
      %981 = vmatpush.bf16.msra.mxu0 %v970
      %982 = vmatpush.bf16.msra.mxu0 %v954
      %983 = vmatmul.bf16.gmra.mxu0 %v966
      %v984 = vpop.f32.mrf.mxu0
      %v985 = vadd.f32 %v962, %v984
      %v986 = vpop.f32.mrf.mxu0
      %987 = vdwg.mxu0
      %988 = vmatpush.bf16.msra.mxu0 0
      %989 = vmatpush.bf16.msra.mxu0 0
      %990 = vmatpush.bf16.msra.mxu0 0
      %991 = vmatpush.bf16.msra.mxu0 0
      %992 = vmatpush.bf16.msra.mxu0 0
      %993 = vmatpush.bf16.msra.mxu0 0
      %994 = vmatpush.bf16.msra.mxu0 %v973
      %995 = vmatpush.bf16.msra.mxu0 %v955
      %996 = vmatmul.bf16.gmra.mxu0 %v966
      %v997 = vpop.f32.mrf.mxu0
      %v998 = vadd.f32 %v962, %v997
      %v999 = vpop.f32.mrf.mxu0
      %1000 = vdwg.mxu0
      %v1001 = vmax.f32 %v985, 0.0
      %v1002 = vmax.f32 %v998, 0.0
      %1003 = vrot.lane.b32.xlu0 %v1001, 3
      %v1004 = vpop.permute.xlu0 %1003
      %1005 = vrot.lane.b32.xlu0 %v1002, 3
      %v1006 = vpop.permute.xlu0 %1005
      %vm1007 = vcmp.lt.s32.totalorder %v306, 3
      %v1008 = vsel %vm1007, %v1004, %v1006
      %v1009 = vsel %vm1007, %v1006, %v1004
      %s1010 = scalar_lea.vmem %s3, 7
      %v1011 = vld [vmem:[%s1010] ss:$8 sm:$0x3]
      %v1013 = vperm.slane %v1011, 0
      %v1014 = vperm.slane %v1011, 1
      %v1017 = vmul.f32 %v1009, %v1013
      %v1018 = vmul.f32 %v1008, %v1014
      %1019 = vst [vmem:[#allocation2] sm:$0xf] %v1017
      %1020 = vst [vmem:[#allocation2 + $0x8] sm:$0xf] %v1018
      %1021 = vrot.lane.b32.xlu0 %v1001, 2
      %v1022 = vpop.permute.xlu0 %1021
      %1023 = vrot.lane.b32.xlu0 %v1002, 2
      %v1024 = vpop.permute.xlu0 %1023
      %v1025 = vsel %vm687, %v1022, %v1024
      %v1026 = vsel %vm687, %v1024, %v1022
      %v1027 = vld [vmem:[%s690] ss:$8 sm:$0x3]
      %v1029 = vperm.slane %v1027, 0
      %v1030 = vperm.slane %v1027, 1
      %v1033 = vmul.f32 %v1026, %v1029
      %v1034 = vmul.f32 %v1025, %v1030
      %v1037 = vrot.slane %v1033, 4
      %v1038 = vrot.slane %v1034, 4
      %1041 = vst [vmem:[#allocation2] sm:$0xf0] %v1037
      %1042 = vst [vmem:[#allocation2 + $0x8] sm:$0xf0] %v1038
      %1043 = vrot.lane.b32.xlu0 %v1001, 1
      %v1044 = vpop.permute.xlu0 %1043
      %1045 = vrot.lane.b32.xlu0 %v1002, 1
      %v1046 = vpop.permute.xlu0 %1045
      %v1047 = vsel %vm367, %v1044, %v1046
      %v1048 = vsel %vm367, %v1046, %v1044
      %v1049 = vld [vmem:[%s370] ss:$8 sm:$0x3]
      %v1051 = vperm.slane %v1049, 0
      %v1052 = vperm.slane %v1049, 1
      %v1055 = vmul.f32 %v1048, %v1051
      %v1056 = vmul.f32 %v1047, %v1052
      %1057 = vst [vmem:[#allocation2 + $0x10] sm:$0xf] %v1055
      %1058 = vst [vmem:[#allocation2 + $0x18] sm:$0xf] %v1056
      %v1061 = vrot.slane %v1001, 4
      %v1062 = vrot.slane %v1002, 4
      %1065 = vst [vmem:[#allocation2 + $0x10] sm:$0xf0] %v1061
      %1066 = vst [vmem:[#allocation2 + $0x18] sm:$0xf0] %v1062
      %1067 = vrot.lane.b32.xlu0 %v1001, 127
      %v1068 = vpop.permute.xlu0 %1067
      %1069 = vrot.lane.b32.xlu0 %v1002, 127
      %v1070 = vpop.permute.xlu0 %1069
      %v1071 = vsel %vm393, %v1068, %v1070
      %v1072 = vsel %vm393, %v1070, %v1068
      %v1073 = vld [vmem:[%s396] ss:$8 sm:$0x3]
      %v1075 = vperm.slane %v1073, 0
      %v1076 = vperm.slane %v1073, 1
      %v1079 = vmul.f32 %v1071, %v1075
      %v1080 = vmul.f32 %v1072, %v1076
      %1081 = vst [vmem:[#allocation2 + $0x20] sm:$0xf] %v1079
      %1082 = vst [vmem:[#allocation2 + $0x28] sm:$0xf] %v1080
      %1083 = vrot.lane.b32.xlu0 %v1001, 126
      %v1084 = vpop.permute.xlu0 %1083
      %1085 = vrot.lane.b32.xlu0 %v1002, 126
      %v1086 = vpop.permute.xlu0 %1085
      %v1087 = vsel %vm751, %v1084, %v1086
      %v1088 = vsel %vm751, %v1086, %v1084
      %v1089 = vld [vmem:[%s754] ss:$8 sm:$0x3]
      %v1091 = vperm.slane %v1089, 0
      %v1092 = vperm.slane %v1089, 1
      %v1095 = vmul.f32 %v1087, %v1091
      %v1096 = vmul.f32 %v1088, %v1092
      %v1099 = vrot.slane %v1095, 4
      %v1100 = vrot.slane %v1096, 4
      %1103 = vst [vmem:[#allocation2 + $0x20] sm:$0xf0] %v1099
      %1104 = vst [vmem:[#allocation2 + $0x28] sm:$0xf0] %v1100
      %1105 = vrot.lane.b32.xlu0 %v1001, 125
      %v1106 = vpop.permute.xlu0 %1105
      %1107 = vrot.lane.b32.xlu0 %v1002, 125
      %v1108 = vpop.permute.xlu0 %1107
      %vm1109 = vcmp.lt.s32.totalorder %v306, 125
      %v1110 = vsel %vm1109, %v1106, %v1108
      %v1111 = vsel %vm1109, %v1108, %v1106
      %s1112 = scalar_lea.vmem %s3, 20
      %v1113 = vld [vmem:[%s1112] ss:$8 sm:$0x3]
      %v1115 = vperm.slane %v1113, 0
      %v1116 = vperm.slane %v1113, 1
      %v1119 = vmul.f32 %v1110, %v1115
      %v1120 = vmul.f32 %v1111, %v1116
      %1121 = vst [vmem:[#allocation2 + $0x30] sm:$0xf] %v1119
      %1122 = vst [vmem:[#allocation2 + $0x38] sm:$0xf] %v1120
      %v1123 = vld [vmem:[%s1 + $0x10] sm:$0xc]
      %v1124 = vld [vmem:[#allocation2] sm:$0xff]
      %v1125 = vld [vmem:[#allocation2 + $0x8] sm:$0xff]
      %v1126 = vld [vmem:[#allocation2 + $0x10] sm:$0xff]
      %v1127 = vld [vmem:[#allocation2 + $0x18] sm:$0xff]
      %v1128 = vld [vmem:[#allocation2 + $0x20] sm:$0xff]
      %v1129 = vld [vmem:[#allocation2 + $0x28] sm:$0xff]
      %v1130 = vld [vmem:[#allocation2 + $0x30] sm:$0xf]
      %v1131 = vld [vmem:[#allocation2 + $0x38] sm:$0xf]
      %v1132 = vpack.c.bf16 %v1126, %v1124
      %v1133 = vpack.c.bf16 %v1127, %v1125
      %v1134 = vpack.c.bf16 %v1130, %v1128
      %v1135 = vpack.c.bf16 %v1131, %v1129
      %v1136 = vld [vmem:[%s2 + $0x24] sm:$0xf]
      %1138 = vset.pattern.permute.xlu0 0
      %1139 = vperm.xlu0 %1138, %v1136
      %v1140 = vpop.permute.xlu0 %1139
      %v1143 = vunpack.c.l.b16 %v1123
      %v1144 = vpack.c.b16 %v1143, %v1143
      %v1145 = vrot.slane %v1144, 2
      %v1147 = vsel %vm964, %v1145, 0
      %v1150 = vsel %vm968, %v1134, 0
      %v1153 = vsel %vm968, %v1135, 0
      %1155 = vmatpush.bf16.msra.mxu0 0
      %1156 = vmatpush.bf16.msra.mxu0 0
      %1157 = vmatpush.bf16.msra.mxu0 0
      %1158 = vmatpush.bf16.msra.mxu0 0
      %1159 = vmatpush.bf16.msra.mxu0 0
      %1160 = vmatpush.bf16.msra.mxu0 0
      %1161 = vmatpush.bf16.msra.mxu0 %v1150
      %1162 = vmatpush.bf16.msra.mxu0 %v1132
      %1163 = vmatmul.bf16.gmra.mxu0 %v1147
      %v1164 = vpop.f32.mrf.mxu0
      %v1165 = vadd.f32 %v1140, %v1164
      %v1166 = vpop.f32.mrf.mxu0
      %1167 = vdwg.mxu0
      %1168 = vmatpush.bf16.msra.mxu0 0
      %1169 = vmatpush.bf16.msra.mxu0 0
      %1170 = vmatpush.bf16.msra.mxu0 0
      %1171 = vmatpush.bf16.msra.mxu0 0
      %1172 = vmatpush.bf16.msra.mxu0 0
      %1173 = vmatpush.bf16.msra.mxu0 0
      %1174 = vmatpush.bf16.msra.mxu0 %v1153
      %1175 = vmatpush.bf16.msra.mxu0 %v1133
      %1176 = vmatmul.bf16.gmra.mxu0 %v1147
      %v1177 = vpop.f32.mrf.mxu0
      %v1178 = vadd.f32 %v1140, %v1177
      %v1179 = vpop.f32.mrf.mxu0
      %1180 = vdwg.mxu0
      %v1181 = vmax.f32 %v1165, 0.0
      %v1182 = vmax.f32 %v1178, 0.0
      %v1185 = vrot.slane %v1181, 4
      %v1186 = vrot.slane %v1182, 4
      %1189 = vst [vmem:[%s197 + $0x10] sm:$0xf0] %v1185
      %1190 = vst [vmem:[%s197 + $0x18] sm:$0xf0] %v1186
      %1191 = vrot.lane.b32.xlu0 %v291, 80
      %v1192 = vpop.permute.xlu0 %1191
      %1193 = vrot.lane.b32.xlu0 %v292, 80
      %v1194 = vpop.permute.xlu0 %1193
      %v1195 = vsel %vm931, %v1192, %v1194
      %v1196 = vsel %vm931, %v1194, %v1192
      %v1197 = vld [vmem:[%s3] ss:$8 sm:$0x3]
      %v1199 = vperm.slane %v1197, 0
      %v1200 = vperm.slane %v1197, 1
      %v1203 = vmul.f32 %v1196, %v1199
      %v1204 = vmul.f32 %v1195, %v1200
      %1205 = vst [vmem:[#allocation2] sm:$0xf] %v1203
      %1206 = vst [vmem:[#allocation2 + $0x8] sm:$0xf] %v1204
      %1207 = vrot.lane.b32.xlu0 %v291, 64
      %v1208 = vpop.permute.xlu0 %1207
      %1209 = vrot.lane.b32.xlu0 %v292, 64
      %v1210 = vpop.permute.xlu0 %1209
      %vm1211 = vcmp.lt.s32.totalorder %v306, 64
      %v1212 = vsel %vm1211, %v1208, %v1210
      %v1213 = vsel %vm1211, %v1210, %v1208
      %s1214 = scalar_lea.vmem %s3, 1
      %v1215 = vld [vmem:[%s1214] ss:$8 sm:$0x3]
      %v1217 = vperm.slane %v1215, 0
      %v1218 = vperm.slane %v1215, 1
      %v1221 = vmul.f32 %v1213, %v1217
      %v1222 = vmul.f32 %v1212, %v1218
      %v1225 = vrot.slane %v1221, 4
      %v1226 = vrot.slane %v1222, 4
      %1229 = vst [vmem:[#allocation2] sm:$0xf0] %v1225
      %1230 = vst [vmem:[#allocation2 + $0x8] sm:$0xf0] %v1226
      %1231 = vrot.lane.b32.xlu0 %v291, 48
      %v1232 = vpop.permute.xlu0 %1231
      %1233 = vrot.lane.b32.xlu0 %v292, 48
      %v1234 = vpop.permute.xlu0 %1233
      %v1235 = vsel %vm835, %v1232, %v1234
      %v1236 = vsel %vm835, %v1234, %v1232
      %v1237 = vld [vmem:[%s838] ss:$8 sm:$0x3]
      %v1239 = vperm.slane %v1237, 0
      %v1240 = vperm.slane %v1237, 1
      %v1243 = vmul.f32 %v1236, %v1239
      %v1244 = vmul.f32 %v1235, %v1240
      %1245 = vst [vmem:[#allocation2 + $0x10] sm:$0xf] %v1243
      %1246 = vst [vmem:[#allocation2 + $0x18] sm:$0xf] %v1244
      %1247 = vrot.lane.b32.xlu0 %v291, 32
      %v1248 = vpop.permute.xlu0 %1247
      %1249 = vrot.lane.b32.xlu0 %v292, 32
      %v1250 = vpop.permute.xlu0 %1249
      %v1251 = vsel %vm550, %v1248, %v1250
      %v1252 = vsel %vm550, %v1250, %v1248
      %v1253 = vld [vmem:[%s553] ss:$8 sm:$0x3]
      %v1255 = vperm.slane %v1253, 0
      %v1256 = vperm.slane %v1253, 1
      %v1259 = vmul.f32 %v1252, %v1255
      %v1260 = vmul.f32 %v1251, %v1256
      %v1263 = vrot.slane %v1259, 4
      %v1264 = vrot.slane %v1260, 4
      %1267 = vst [vmem:[#allocation2 + $0x10] sm:$0xf0] %v1263
      %1268 = vst [vmem:[#allocation2 + $0x18] sm:$0xf0] %v1264
      %1269 = vrot.lane.b32.xlu0 %v291, 16
      %v1270 = vpop.permute.xlu0 %1269
      %1271 = vrot.lane.b32.xlu0 %v292, 16
      %v1272 = vpop.permute.xlu0 %1271
      %v1273 = vsel %vm325, %v1270, %v1272
      %v1274 = vsel %vm325, %v1272, %v1270
      %v1275 = vld [vmem:[%s328] ss:$8 sm:$0x3]
      %v1277 = vperm.slane %v1275, 0
      %v1278 = vperm.slane %v1275, 1
      %v1281 = vmul.f32 %v1274, %v1277
      %v1282 = vmul.f32 %v1273, %v1278
      %1283 = vst [vmem:[#allocation2 + $0x20] sm:$0xf] %v1281
      %1284 = vst [vmem:[#allocation2 + $0x28] sm:$0xf] %v1282
      %v1287 = vrot.slane %v291, 4
      %v1288 = vrot.slane %v292, 4
      %1291 = vst [vmem:[#allocation2 + $0x20] sm:$0xf0] %v1287
      %1292 = vst [vmem:[#allocation2 + $0x28] sm:$0xf0] %v1288
      %1293 = vrot.lane.b32.xlu0 %v291, 112
      %v1294 = vpop.permute.xlu0 %1293
      %1295 = vrot.lane.b32.xlu0 %v292, 112
      %v1296 = vpop.permute.xlu0 %1295
      %v1297 = vsel %vm435, %v1294, %v1296
      %v1298 = vsel %vm435, %v1296, %v1294
      %v1299 = vld [vmem:[%s438] ss:$8 sm:$0x3]
      %v1301 = vperm.slane %v1299, 0
      %v1302 = vperm.slane %v1299, 1
      %v1305 = vmul.f32 %v1297, %v1301
      %v1306 = vmul.f32 %v1298, %v1302
      %1307 = vst [vmem:[#allocation2 + $0x30] sm:$0xf] %v1305
      %1308 = vst [vmem:[#allocation2 + $0x38] sm:$0xf] %v1306
      %1309 = vrot.lane.b32.xlu0 %v291, 96
      %v1310 = vpop.permute.xlu0 %1309
      %1311 = vrot.lane.b32.xlu0 %v292, 96
      %v1312 = vpop.permute.xlu0 %1311
      %v1313 = vsel %vm614, %v1310, %v1312
      %v1314 = vsel %vm614, %v1312, %v1310
      %v1315 = vld [vmem:[%s617] ss:$8 sm:$0x3]
      %v1317 = vperm.slane %v1315, 0
      %v1318 = vperm.slane %v1315, 1
      %v1321 = vmul.f32 %v1313, %v1317
      %v1322 = vmul.f32 %v1314, %v1318
      %v1325 = vrot.slane %v1321, 4
      %v1326 = vrot.slane %v1322, 4
      %1329 = vst [vmem:[#allocation2 + $0x30] sm:$0xf0] %v1325
      %1330 = vst [vmem:[#allocation2 + $0x38] sm:$0xf0] %v1326
      %v1331 = vld [vmem:[%s934] ss:$8 sm:$0x3]
      %v1333 = vperm.slane %v1331, 0
      %v1334 = vperm.slane %v1331, 1
      %v1337 = vmul.f32 %v1195, %v1333
      %v1338 = vmul.f32 %v1196, %v1334
      %1339 = vst [vmem:[#allocation2 + $0x40] sm:$0xf] %v1337
      %1340 = vst [vmem:[#allocation2 + $0x48] sm:$0xf] %v1338
      %s1341 = scalar_lea.vmem %s3, 34
      %v1342 = vld [vmem:[%s1341] ss:$8 sm:$0x3]
      %v1344 = vperm.slane %v1342, 0
      %v1345 = vperm.slane %v1342, 1
      %v1348 = vmul.f32 %v1212, %v1344
      %v1349 = vmul.f32 %v1213, %v1345
      %v1352 = vrot.slane %v1348, 4
      %v1353 = vrot.slane %v1349, 4
      %1356 = vst [vmem:[#allocation2 + $0x40] sm:$0xf0] %v1352
      %1357 = vst [vmem:[#allocation2 + $0x48] sm:$0xf0] %v1353
      %s1358 = scalar_lea.vmem %s3, 35
      %v1359 = vld [vmem:[%s1358] ss:$8 sm:$0x3]
      %v1361 = vperm.slane %v1359, 0
      %v1362 = vperm.slane %v1359, 1
      %v1365 = vmul.f32 %v1235, %v1361
      %v1366 = vmul.f32 %v1236, %v1362
      %1367 = vst [vmem:[#allocation2 + $0x50] sm:$0xf] %v1365
      %1368 = vst [vmem:[#allocation2 + $0x58] sm:$0xf] %v1366
      %v1369 = vld [vmem:[%s1 + $0x14] sm:$0x3]
      %v1370 = vld [vmem:[#allocation2] sm:$0xff]
      %v1371 = vld [vmem:[#allocation2 + $0x8] sm:$0xff]
      %v1372 = vld [vmem:[#allocation2 + $0x10] sm:$0xff]
      %v1373 = vld [vmem:[#allocation2 + $0x18] sm:$0xff]
      %v1374 = vld [vmem:[#allocation2 + $0x20] sm:$0xff]
      %v1375 = vld [vmem:[#allocation2 + $0x28] sm:$0xff]
      %v1376 = vld [vmem:[#allocation2 + $0x30] sm:$0xff]
      %v1377 = vld [vmem:[#allocation2 + $0x38] sm:$0xff]
      %v1378 = vld [vmem:[#allocation2 + $0x40] sm:$0xff]
      %v1379 = vld [vmem:[#allocation2 + $0x48] sm:$0xff]
      %v1380 = vld [vmem:[#allocation2 + $0x50] sm:$0xf]
      %v1381 = vld [vmem:[#allocation2 + $0x58] sm:$0xf]
      %v1382 = vpack.c.bf16 %v1372, %v1370
      %v1383 = vpack.c.bf16 %v1373, %v1371
      %v1384 = vpack.c.bf16 %v1376, %v1374
      %v1385 = vpack.c.bf16 %v1377, %v1375
      %v1386 = vpack.c.bf16 %v1380, %v1378
      %v1387 = vpack.c.bf16 %v1381, %v1379
      %v1388 = vld [vmem:[%s2 + $0x28] sm:$0xf]
      %1390 = vset.pattern.permute.xlu0 0
      %1391 = vperm.xlu0 %1390, %v1388
      %v1392 = vpop.permute.xlu0 %1391
      %vm1394 = vcmask 359424
      %v1396 = vsel %vm1394, %v1369, 0
      %v1399 = vsel %vm968, %v1386, 0
      %v1402 = vsel %vm968, %v1387, 0
      %1404 = vmatpush.bf16.msra.mxu0 0
      %1405 = vmatpush.bf16.msra.mxu0 0
      %1406 = vmatpush.bf16.msra.mxu0 0
      %1407 = vmatpush.bf16.msra.mxu0 0
      %1408 = vmatpush.bf16.msra.mxu0 0
      %1409 = vmatpush.bf16.msra.mxu0 %v1399
      %1410 = vmatpush.bf16.msra.mxu0 %v1384
      %1411 = vmatpush.bf16.msra.mxu0 %v1382
      %1412 = vmatmul.bf16.gmra.mxu0 %v1396
      %v1413 = vpop.f32.mrf.mxu0
      %v1414 = vadd.f32 %v1392, %v1413
      %v1415 = vpop.f32.mrf.mxu0
      %1416 = vdwg.mxu0
      %1417 = vmatpush.bf16.msra.mxu0 0
      %1418 = vmatpush.bf16.msra.mxu0 0
      %1419 = vmatpush.bf16.msra.mxu0 0
      %1420 = vmatpush.bf16.msra.mxu0 0
      %1421 = vmatpush.bf16.msra.mxu0 0
      %1422 = vmatpush.bf16.msra.mxu0 %v1402
      %1423 = vmatpush.bf16.msra.mxu0 %v1385
      %1424 = vmatpush.bf16.msra.mxu0 %v1383
      %1425 = vmatmul.bf16.gmra.mxu0 %v1396
      %v1426 = vpop.f32.mrf.mxu0
      %v1427 = vadd.f32 %v1392, %v1426
      %v1428 = vpop.f32.mrf.mxu0
      %1429 = vdwg.mxu0
      %v1430 = vmax.f32 %v1414, 0.0
      %v1431 = vmax.f32 %v1427, 0.0
      %1432 = vst [vmem:[%s197 + $0x20] sm:$0xf] %v1430
      %1433 = vst [vmem:[%s197 + $0x28] sm:$0xf] %v1431
      %p1434 = scmp.lt.s32.totalorder %s15, 1
      %s1435 = scalar_select %p1434, %s15, 1
      %s1436 = smul.addr %s1435, 6
      %s1437 = smul.addr %s1436, 8
      %s1438 = scalar_lea.vmem %s4, %s1437
      // Predicated region
      $region37: #{msst_forward.1} parent=35 // pred_check
        %p1439 = pneg %p122
      $region38: #{msst_forward.1} parent=35 // pred_check_branch
        %1441 = sbr.rel (%p1439) target = $region40
      $region39: #{msst_forward.1} parent=35 // pred_region
        _
      $region40: #{msst_forward.1} parent=35 // pred_fallthru
        _
    $region36: #{msst_forward.1} parent=5 // pred_fallthru
      _
    %p1442 = scmp.le.s32.totalorder 2, %s10
    // Predicated region
    $region41: #{msst_forward.1} parent=5 // pred_check
      %p1443 = pneg %p1442
    $region42: #{msst_forward.1} parent=5 // pred_check_branch
      %1445 = sbr.rel (%p1443) target = $region44
    $region43: #{msst_forward.1} parent=5 // pred_region
      %s1446 = ssub.s32 %s10, 2
      // Predicated region
      $region45: #{msst_forward.1} parent=43 // pred_check
        %p1447 = pneg %p128
      $region46: #{msst_forward.1} parent=43 // pred_check_branch
        %1449 = sbr.rel (%p1447) target = $region48
      $region47: #{msst_forward.1} parent=43 // pred_region
        %p1450 = scmp.lt.s32.totalorder %s16, 1
        %s1451 = scalar_select %p1450, %s16, 1
        %s1452 = smul.addr %s1451, 6
        %s1453 = smul.addr %s1452, 8
        %s1454 = scalar_lea.vmem %s4, %s1453
      $region48: #{msst_forward.1} parent=43 // pred_fallthru
        _
    $region44: #{msst_forward.1} parent=5 // pred_fallthru
      _
  $region6: #{msst_forward.1} parent=0 // loop_footer
    %s14 = sadd.s32 1, %s10
  $region7: #{msst_forward.1} parent=0 // loop_footer_branch
    %9 = sbr.rel target = $region3
  $region8: #{msst_forward.1} parent=0 // loop_exit
    _

</llo_original>
